<compile_context>
chip_gen: v7x
topology: tpu7x:2x2x1
jax: 0.10.0
libtpu: 0.0.40
codegen_flags: <defaults>
</compile_context>

<pallas_src>
import functools

import jax
import jax.numpy as jnp
import numpy as np
from jax.experimental import pallas as pl

_LANES = 128   # lane width of the packed weight buffer
_SLOT = 16     # row alignment of every packed block (bf16 native tile = (16, 128))


# ------------------------------ fused kernel ---------------------------------

def fused_forward_kernel(x_ref, w_ref, o_ref, *, plan, batch, stride,
                         num_class):
    """Whole forward pass on one merged (B*W, C) activation matrix.

    plan   : static tuple of layer descriptors (built by _pack_weights).
    stride : per-batch row stride (= original width W).  Every op slices from
             row 0, so batch b's valid rows always start at row b*stride.
    """
    f32, bf16 = jnp.float32, jnp.bfloat16
    x = x_ref[...]                                            # (B*W, C0) f32

    def tap_matmul(x, dil, cin, cout, taps, boff):
        # y[r] = sum_t x[r + t*dil] @ W_t + bias   (contiguous slices only).
        rows = x.shape[0] - (len(taps) - 1) * dil
        acc = None
        for t, off in enumerate(taps):
            wt = w_ref[off:off + cin, 0:cout]                 # bf16 (cin, cout)
            part = jnp.dot(x[t * dil:t * dil + rows, :].astype(bf16), wt,
                           preferred_element_type=f32)
            acc = part if acc is None else acc + part
        return acc + w_ref[boff:boff + 1, 0:cout].astype(f32)

    for layer in plan:
        kind = layer[0]
        if kind == "conv":
            _, dil, cin, cout, taps, boff = layer
            x = jnp.maximum(tap_matmul(x, dil, cin, cout, taps, boff), 0.0)
        elif kind == "pool":
            # MaxPool1d(2,2): pairwise max of d-shifted slices; subsequent
            # layers use doubled dilation (encoded in their descriptors).
            dil = layer[1]
            rows = x.shape[0] - dil
            x = jnp.maximum(x[0:rows, :], x[dil:dil + rows, :])
        elif kind == "fc0":
            # First FC with the NCW flatten folded into per-width taps.
            _, dil, cin, cout, taps, boff = layer
            x = jnp.maximum(tap_matmul(x, dil, cin, cout, taps, boff), 0.0)
            # Each batch element is now a single row at b*stride: gather them.
            x = jnp.concatenate(
                [x[b * stride:b * stride + 1, :] for b in range(batch)],
                axis=0)                                       # (B, units)
        elif kind == "fc":
            _, cin, cout, woff, boff = layer
            w = w_ref[woff:woff + cin, 0:cout]
            b = w_ref[boff:boff + 1, 0:cout].astype(f32)
            x = jnp.maximum(
                jnp.dot(x.astype(bf16), w, preferred_element_type=f32) + b,
                0.0)
        else:  # "head": logits, softmax over [:-1], passthrough last raw logit.
            _, cin, woff, boff = layer
            w = w_ref[woff:woff + cin, :]                     # (cin, 128), 0-padded
            b = w_ref[boff:boff + 1, :].astype(f32)
            logits = jnp.dot(x.astype(bf16), w,
                             preferred_element_type=f32) + b  # (B, 128)
            s = logits[:, 0:num_class - 1]
            m = jnp.max(s, axis=-1, keepdims=True)
            e = jnp.exp(logits - m)
            inv = pl.reciprocal(
                jnp.sum(e[:, 0:num_class - 1], axis=-1, keepdims=True),
                approx=True)
            col = jax.lax.broadcasted_iota(jnp.int32, logits.shape, 1)
            # Lanes < nc-1: softmax; lane nc-1: raw logit; lanes >= nc: zero
            # (weight columns are zero-padded).  One dense 128-lane store.
            o_ref[...] = jnp.where(col < num_class - 1, e * inv,
                                   logits).astype(o_ref.dtype)


# --------------------------- weight packing / plan -----------------------------

def _pack_weights(params, *, num_conv_outer, num_conv_inner, num_hidden,
                  ksize, in_ch, in_w):
    """Pack every weight/bias into one (rows, 128) bf16 buffer (16-row-aligned
    slots, zero padded) and build the static layer plan with row offsets."""
    blocks, plan = [], []
    row = 0

    def put(a):
        nonlocal row
        a = jnp.asarray(a, jnp.float32)
        r, c = a.shape
        sr = ((r + _SLOT - 1) // _SLOT) * _SLOT
        blocks.append(jnp.pad(a, ((0, sr - r), (0, _LANES - c))))
        off = row
        row += sr
        return off

    cin, width, dil = in_ch, in_w, 1
    for i in range(num_conv_outer):
        for j in range(num_conv_inner):
            w3 = params[f"conv_w_{i}_{j}"]                    # (K, Cin, Cout)
            k, ci, co = w3.shape
            taps = tuple(put(w3[t]) for t in range(k))
            boff = put(params[f"conv_b_{i}_{j}"])
            plan.append(("conv", dil, ci, co, taps, boff))
            width = width - k + 1
            cin = co
        plan.append(("pool", dil))
        width = (width - 2) // 2 + 1
        dil *= 2
        # Valid samples of one batch must never reach the next batch's rows.
        assert width >= 1 and (width - 1) * dil < in_w, "batch blocks overlap"

    # First FC folds PyTorch's x.view(B, -1) (NCW order): fc_w_0 row
    # (c*Wf + w) becomes tap w, row c.
    cf, wf = cin, width
    fw0 = params["fc_w_0"].reshape(cf, wf, -1).transpose(1, 0, 2)  # (Wf, Cf, U)
    units = fw0.shape[-1]
    taps = tuple(put(fw0[t]) for t in range(wf))
    boff = put(params["fc_b_0"])
    plan.append(("fc0", dil, cf, units, taps, boff))
    indim = units
    for i in range(1, num_hidden):
        fw = params[f"fc_w_{i}"]
        plan.append(("fc", indim, fw.shape[1], put(fw),
                     put(params[f"fc_b_{i}"])))
        indim = fw.shape[1]
    plan.append(("head", indim, put(params["out_w"]), put(params["out_b"])))

    wbuf = jnp.concatenate(blocks, axis=0).astype(jnp.bfloat16)
    return wbuf, tuple(plan)


# ------------------------------- wrapper ---------------------------------------

@functools.partial(jax.jit, static_argnames=(
    "num_conv_outer", "num_conv_inner", "num_hidden", "ksize", "num_class"))
def bad_model_forward(params, x_ncw, *, num_conv_outer, num_conv_inner,
                      num_hidden, ksize, num_class):
    batch, cin, width = x_ncw.shape
    # Merged NWC activation matrix: batch b occupies rows [b*W, (b+1)*W).
    xbuf = jnp.transpose(x_ncw, (0, 2, 1)).reshape(batch * width,
                                                   cin).astype(jnp.float32)
    wbuf, plan = _pack_weights(params, num_conv_outer=num_conv_outer,
                               num_conv_inner=num_conv_inner,
                               num_hidden=num_hidden, ksize=ksize,
                               in_ch=cin, in_w=width)
    kernel = functools.partial(fused_forward_kernel, plan=plan, batch=batch,
                               stride=width, num_class=num_class)
    # Single grid-less invocation: 2 input DMAs (merged x, packed weights),
    # everything else stays in vregs/VMEM, one dense (B, 128) output store.
    # TODO(synk): for large batches add a "parallel" batch grid axis (v7x has 2
    # TensorCores) and re-derive the VMEM budget (64 MiB physical on v7x).
    out_pad = pl.pallas_call(
        kernel,
        out_shape=jax.ShapeDtypeStruct((batch, _LANES), jnp.float32),
    )(xbuf, wbuf)
    return out_pad[:, :num_class]          # lane-dense store; slice in wrapper


# ------------------------------ parameters ------------------------------------

def init_params(key, *, num_conv_outer, num_conv_inner, ksize, num_hidden,
                num_unit, nchannel_base, num_class, in_width):
    params = {}
    indim = 6
    cur_w = in_width
    outdim = None
    for i in range(num_conv_outer):
        outdim = nchannel_base * 2 ** i
        for j in range(num_conv_inner):
            key, k1, k2 = jax.random.split(key, 3)
            scale = 1.0 / np.sqrt(indim * ksize)
            # conv weight stored as (K, Cin, Cout); semantics identical to
            # PyTorch's cross-correlation since we init it ourselves.
            params[f"conv_w_{i}_{j}"] = scale * jax.random.normal(
                k1, (ksize, indim, outdim), jnp.float32)
            params[f"conv_b_{i}_{j}"] = scale * jax.random.normal(
                k2, (1, outdim), jnp.float32)
            cur_w = cur_w - ksize + 1
            indim = outdim
        cur_w = (cur_w - 2) // 2 + 1
    indim = outdim * cur_w
    for i in range(num_hidden):
        key, k1, k2 = jax.random.split(key, 3)
        scale = 1.0 / np.sqrt(indim)
        params[f"fc_w_{i}"] = scale * jax.random.normal(
            k1, (indim, num_unit), jnp.float32)
        params[f"fc_b_{i}"] = scale * jax.random.normal(
            k2, (1, num_unit), jnp.float32)
        indim = num_unit
    key, k1, k2 = jax.random.split(key, 3)
    scale = 1.0 / np.sqrt(indim)
    params["out_w"] = scale * jax.random.normal(k1, (indim, num_class),
                                                jnp.float32)
    params["out_b"] = scale * jax.random.normal(k2, (1, num_class), jnp.float32)
    return params


# --------------------------- pure-JAX reference --------------------------------

def reference_forward(params, x_ncw, *, num_conv_outer, num_conv_inner,
                      num_hidden):
    hi = jax.lax.Precision.HIGHEST
    x = jnp.transpose(x_ncw, (0, 2, 1))
    for i in range(num_conv_outer):
        for j in range(num_conv_inner):
            w = params[f"conv_w_{i}_{j}"]
            b = params[f"conv_b_{i}_{j}"]
            K = w.shape[0]
            Wout = x.shape[1] - K + 1
            acc = jnp.zeros((x.shape[0], Wout, w.shape[2]), jnp.float32) + b
            for k in range(K):
                acc = acc + jnp.einsum("bwc,co->bwo", x[:, k:k + Wout, :], w[k],
                                       precision=hi)
            x = jnp.maximum(acc, 0.0)
        P = (x.shape[1] - 2) // 2 + 1
        x = jnp.maximum(x[:, 0:2 * P:2, :], x[:, 1:2 * P:2, :])
    x = jnp.transpose(x, (0, 2, 1)).reshape(x.shape[0], -1)   # PyTorch view(B,-1)
    for i in range(num_hidden):
        x = jnp.maximum(
            jnp.dot(x, params[f"fc_w_{i}"], precision=hi) + params[f"fc_b_{i}"],
            0.0)
    logits = jnp.dot(x, params["out_w"], precision=hi) + params["out_b"]
    sm = jax.nn.softmax(logits[:, :-1], axis=1)
    return jnp.concatenate([sm, logits[:, -1:]], axis=1)


# ------------------------------------ main -------------------------------------

if __name__ == "__main__":
    cfg = dict(num_conv_outer=2, num_conv_inner=2, ksize=3, num_hidden=1,
               num_unit=32, nchannel_base=6, num_class=10)
    B, Cin, W = 2, 6, 32

    key = jax.random.PRNGKey(0)
    kp, kx = jax.random.split(key)
    params = init_params(kp, in_width=W, **cfg)
    x = jax.random.normal(kx, (B, Cin, W), jnp.float32)

    out = bad_model_forward(params, x,
                            num_conv_outer=cfg["num_conv_outer"],
                            num_conv_inner=cfg["num_conv_inner"],
                            num_hidden=cfg["num_hidden"],
                            ksize=cfg["ksize"],
                            num_class=cfg["num_class"])
    out = jax.block_until_ready(out)

    ref = reference_forward(params, x,
                            num_conv_outer=cfg["num_conv_outer"],
                            num_conv_inner=cfg["num_conv_inner"],
                            num_hidden=cfg["num_hidden"])

    assert out.shape == (B, cfg["num_class"])
    assert bool(jnp.all(jnp.isfinite(out)))
    assert np.allclose(np.asarray(out), np.asarray(ref), atol=5e-2, rtol=5e-2), (
        "mismatch vs reference: max abs diff "
        f"{float(jnp.max(jnp.abs(out - ref)))}")
    print("KERNEL_OK")
</pallas_src>

<mosaic_0001>
module attributes {stable_mosaic.version = 11 : i64} {
  func.func @fused_forward_kernel(%arg0: memref<64x6xf32, #tpu.memory_space<vmem>>, %arg1: memref<400x128xbf16, #tpu.memory_space<vmem>>, %arg2: memref<2x128xf32, #tpu.memory_space<vmem>>) attributes {dimension_semantics = [], scalar_prefetch = 0 : i64, scratch_operands = 0 : i64, tpu.core_type = #tpu.core_type<tc>} {
    %c0 = arith.constant 0 : index
    %c0_0 = arith.constant 0 : index
    %0 = vector.load %arg0[%c0, %c0_0] : memref<64x6xf32, #tpu.memory_space<vmem>>, vector<64x6xf32>
    %c0_1 = arith.constant 0 : index
    %c0_2 = arith.constant 0 : index
    %1 = vector.load %arg1[%c0_1, %c0_2] : memref<400x128xbf16, #tpu.memory_space<vmem>>, vector<6x6xbf16>
    %2 = vector.extract_strided_slice %0 {offsets = [0, 0], sizes = [62, 6], strides = [1, 1]} : vector<64x6xf32> to vector<62x6xf32>
    %3 = arith.truncf %2 : vector<62x6xf32> to vector<62x6xbf16>
    %cst = arith.constant dense<0.000000e+00> : vector<62x6xf32>
    %4 = tpu.matmul %3, %1, %cst {dimension_numbers = #tpu.dot_dimension_numbers<[1], [0], [0], [1], [0, 0, 1, 1], [], []>} : vector<62x6xbf16>, vector<6x6xbf16>, vector<62x6xf32> -> vector<62x6xf32>
    %c16 = arith.constant 16 : index
    %c0_3 = arith.constant 0 : index
    %5 = vector.load %arg1[%c16, %c0_3] : memref<400x128xbf16, #tpu.memory_space<vmem>>, vector<6x6xbf16>
    %6 = vector.extract_strided_slice %0 {offsets = [1, 0], sizes = [62, 6], strides = [1, 1]} : vector<64x6xf32> to vector<62x6xf32>
    %7 = arith.truncf %6 : vector<62x6xf32> to vector<62x6xbf16>
    %cst_4 = arith.constant dense<0.000000e+00> : vector<62x6xf32>
    %8 = tpu.matmul %7, %5, %cst_4 {dimension_numbers = #tpu.dot_dimension_numbers<[1], [0], [0], [1], [0, 0, 1, 1], [], []>} : vector<62x6xbf16>, vector<6x6xbf16>, vector<62x6xf32> -> vector<62x6xf32>
    %9 = arith.addf %4, %8 : vector<62x6xf32>
    %c32 = arith.constant 32 : index
    %c0_5 = arith.constant 0 : index
    %10 = vector.load %arg1[%c32, %c0_5] : memref<400x128xbf16, #tpu.memory_space<vmem>>, vector<6x6xbf16>
    %11 = vector.extract_strided_slice %0 {offsets = [2, 0], sizes = [62, 6], strides = [1, 1]} : vector<64x6xf32> to vector<62x6xf32>
    %12 = arith.truncf %11 : vector<62x6xf32> to vector<62x6xbf16>
    %cst_6 = arith.constant dense<0.000000e+00> : vector<62x6xf32>
    %13 = tpu.matmul %12, %10, %cst_6 {dimension_numbers = #tpu.dot_dimension_numbers<[1], [0], [0], [1], [0, 0, 1, 1], [], []>} : vector<62x6xbf16>, vector<6x6xbf16>, vector<62x6xf32> -> vector<62x6xf32>
    %14 = arith.addf %9, %13 : vector<62x6xf32>
    %c48 = arith.constant 48 : index
    %c0_7 = arith.constant 0 : index
    %15 = vector.load %arg1[%c48, %c0_7] : memref<400x128xbf16, #tpu.memory_space<vmem>>, vector<1x6xbf16>
    %16 = arith.extf %15 : vector<1x6xbf16> to vector<1x6xf32>
    %17 = vector.broadcast %16 : vector<1x6xf32> to vector<62x6xf32>
    %18 = arith.addf %14, %17 : vector<62x6xf32>
    %cst_8 = arith.constant 0.000000e+00 : f32
    %19 = vector.broadcast %cst_8 : f32 to vector<62x6xf32>
    %20 = arith.maximumf %18, %19 : vector<62x6xf32>
    %c64 = arith.constant 64 : index
    %c0_9 = arith.constant 0 : index
    %21 = vector.load %arg1[%c64, %c0_9] : memref<400x128xbf16, #tpu.memory_space<vmem>>, vector<6x6xbf16>
    %22 = vector.extract_strided_slice %20 {offsets = [0, 0], sizes = [60, 6], strides = [1, 1]} : vector<62x6xf32> to vector<60x6xf32>
    %23 = arith.truncf %22 : vector<60x6xf32> to vector<60x6xbf16>
    %cst_10 = arith.constant dense<0.000000e+00> : vector<60x6xf32>
    %24 = tpu.matmul %23, %21, %cst_10 {dimension_numbers = #tpu.dot_dimension_numbers<[1], [0], [0], [1], [0, 0, 1, 1], [], []>} : vector<60x6xbf16>, vector<6x6xbf16>, vector<60x6xf32> -> vector<60x6xf32>
    %c80 = arith.constant 80 : index
    %c0_11 = arith.constant 0 : index
    %25 = vector.load %arg1[%c80, %c0_11] : memref<400x128xbf16, #tpu.memory_space<vmem>>, vector<6x6xbf16>
    %26 = vector.extract_strided_slice %20 {offsets = [1, 0], sizes = [60, 6], strides = [1, 1]} : vector<62x6xf32> to vector<60x6xf32>
    %27 = arith.truncf %26 : vector<60x6xf32> to vector<60x6xbf16>
    %cst_12 = arith.constant dense<0.000000e+00> : vector<60x6xf32>
    %28 = tpu.matmul %27, %25, %cst_12 {dimension_numbers = #tpu.dot_dimension_numbers<[1], [0], [0], [1], [0, 0, 1, 1], [], []>} : vector<60x6xbf16>, vector<6x6xbf16>, vector<60x6xf32> -> vector<60x6xf32>
    %29 = arith.addf %24, %28 : vector<60x6xf32>
    %c96 = arith.constant 96 : index
    %c0_13 = arith.constant 0 : index
    %30 = vector.load %arg1[%c96, %c0_13] : memref<400x128xbf16, #tpu.memory_space<vmem>>, vector<6x6xbf16>
    %31 = vector.extract_strided_slice %20 {offsets = [2, 0], sizes = [60, 6], strides = [1, 1]} : vector<62x6xf32> to vector<60x6xf32>
    %32 = arith.truncf %31 : vector<60x6xf32> to vector<60x6xbf16>
    %cst_14 = arith.constant dense<0.000000e+00> : vector<60x6xf32>
    %33 = tpu.matmul %32, %30, %cst_14 {dimension_numbers = #tpu.dot_dimension_numbers<[1], [0], [0], [1], [0, 0, 1, 1], [], []>} : vector<60x6xbf16>, vector<6x6xbf16>, vector<60x6xf32> -> vector<60x6xf32>
    %34 = arith.addf %29, %33 : vector<60x6xf32>
    %c112 = arith.constant 112 : index
    %c0_15 = arith.constant 0 : index
    %35 = vector.load %arg1[%c112, %c0_15] : memref<400x128xbf16, #tpu.memory_space<vmem>>, vector<1x6xbf16>
    %36 = arith.extf %35 : vector<1x6xbf16> to vector<1x6xf32>
    %37 = vector.broadcast %36 : vector<1x6xf32> to vector<60x6xf32>
    %38 = arith.addf %34, %37 : vector<60x6xf32>
    %cst_16 = arith.constant 0.000000e+00 : f32
    %39 = vector.broadcast %cst_16 : f32 to vector<60x6xf32>
    %40 = arith.maximumf %38, %39 : vector<60x6xf32>
    %41 = vector.extract_strided_slice %40 {offsets = [0, 0], sizes = [59, 6], strides = [1, 1]} : vector<60x6xf32> to vector<59x6xf32>
    %42 = vector.extract_strided_slice %40 {offsets = [1, 0], sizes = [59, 6], strides = [1, 1]} : vector<60x6xf32> to vector<59x6xf32>
    %43 = arith.maximumf %41, %42 : vector<59x6xf32>
    %c128 = arith.constant 128 : index
    %c0_17 = arith.constant 0 : index
    %44 = vector.load %arg1[%c128, %c0_17] : memref<400x128xbf16, #tpu.memory_space<vmem>>, vector<6x12xbf16>
    %45 = vector.extract_strided_slice %43 {offsets = [0, 0], sizes = [55, 6], strides = [1, 1]} : vector<59x6xf32> to vector<55x6xf32>
    %46 = arith.truncf %45 : vector<55x6xf32> to vector<55x6xbf16>
    %cst_18 = arith.constant dense<0.000000e+00> : vector<55x12xf32>
    %47 = tpu.matmul %46, %44, %cst_18 {dimension_numbers = #tpu.dot_dimension_numbers<[1], [0], [0], [1], [0, 0, 1, 1], [], []>} : vector<55x6xbf16>, vector<6x12xbf16>, vector<55x12xf32> -> vector<55x12xf32>
    %c144 = arith.constant 144 : index
    %c0_19 = arith.constant 0 : index
    %48 = vector.load %arg1[%c144, %c0_19] : memref<400x128xbf16, #tpu.memory_space<vmem>>, vector<6x12xbf16>
    %49 = vector.extract_strided_slice %43 {offsets = [2, 0], sizes = [55, 6], strides = [1, 1]} : vector<59x6xf32> to vector<55x6xf32>
    %50 = arith.truncf %49 : vector<55x6xf32> to vector<55x6xbf16>
    %cst_20 = arith.constant dense<0.000000e+00> : vector<55x12xf32>
    %51 = tpu.matmul %50, %48, %cst_20 {dimension_numbers = #tpu.dot_dimension_numbers<[1], [0], [0], [1], [0, 0, 1, 1], [], []>} : vector<55x6xbf16>, vector<6x12xbf16>, vector<55x12xf32> -> vector<55x12xf32>
    %52 = arith.addf %47, %51 : vector<55x12xf32>
    %c160 = arith.constant 160 : index
    %c0_21 = arith.constant 0 : index
    %53 = vector.load %arg1[%c160, %c0_21] : memref<400x128xbf16, #tpu.memory_space<vmem>>, vector<6x12xbf16>
    %54 = vector.extract_strided_slice %43 {offsets = [4, 0], sizes = [55, 6], strides = [1, 1]} : vector<59x6xf32> to vector<55x6xf32>
    %55 = arith.truncf %54 : vector<55x6xf32> to vector<55x6xbf16>
    %cst_22 = arith.constant dense<0.000000e+00> : vector<55x12xf32>
    %56 = tpu.matmul %55, %53, %cst_22 {dimension_numbers = #tpu.dot_dimension_numbers<[1], [0], [0], [1], [0, 0, 1, 1], [], []>} : vector<55x6xbf16>, vector<6x12xbf16>, vector<55x12xf32> -> vector<55x12xf32>
    %57 = arith.addf %52, %56 : vector<55x12xf32>
    %c176 = arith.constant 176 : index
    %c0_23 = arith.constant 0 : index
    %58 = vector.load %arg1[%c176, %c0_23] : memref<400x128xbf16, #tpu.memory_space<vmem>>, vector<1x12xbf16>
    %59 = arith.extf %58 : vector<1x12xbf16> to vector<1x12xf32>
    %60 = vector.broadcast %59 : vector<1x12xf32> to vector<55x12xf32>
    %61 = arith.addf %57, %60 : vector<55x12xf32>
    %cst_24 = arith.constant 0.000000e+00 : f32
    %62 = vector.broadcast %cst_24 : f32 to vector<55x12xf32>
    %63 = arith.maximumf %61, %62 : vector<55x12xf32>
    %c192 = arith.constant 192 : index
    %c0_25 = arith.constant 0 : index
    %64 = vector.load %arg1[%c192, %c0_25] : memref<400x128xbf16, #tpu.memory_space<vmem>>, vector<12x12xbf16>
    %65 = vector.extract_strided_slice %63 {offsets = [0, 0], sizes = [51, 12], strides = [1, 1]} : vector<55x12xf32> to vector<51x12xf32>
    %66 = arith.truncf %65 : vector<51x12xf32> to vector<51x12xbf16>
    %cst_26 = arith.constant dense<0.000000e+00> : vector<51x12xf32>
    %67 = tpu.matmul %66, %64, %cst_26 {dimension_numbers = #tpu.dot_dimension_numbers<[1], [0], [0], [1], [0, 0, 1, 1], [], []>} : vector<51x12xbf16>, vector<12x12xbf16>, vector<51x12xf32> -> vector<51x12xf32>
    %c208 = arith.constant 208 : index
    %c0_27 = arith.constant 0 : index
    %68 = vector.load %arg1[%c208, %c0_27] : memref<400x128xbf16, #tpu.memory_space<vmem>>, vector<12x12xbf16>
    %69 = vector.extract_strided_slice %63 {offsets = [2, 0], sizes = [51, 12], strides = [1, 1]} : vector<55x12xf32> to vector<51x12xf32>
    %70 = arith.truncf %69 : vector<51x12xf32> to vector<51x12xbf16>
    %cst_28 = arith.constant dense<0.000000e+00> : vector<51x12xf32>
    %71 = tpu.matmul %70, %68, %cst_28 {dimension_numbers = #tpu.dot_dimension_numbers<[1], [0], [0], [1], [0, 0, 1, 1], [], []>} : vector<51x12xbf16>, vector<12x12xbf16>, vector<51x12xf32> -> vector<51x12xf32>
    %72 = arith.addf %67, %71 : vector<51x12xf32>
    %c224 = arith.constant 224 : index
    %c0_29 = arith.constant 0 : index
    %73 = vector.load %arg1[%c224, %c0_29] : memref<400x128xbf16, #tpu.memory_space<vmem>>, vector<12x12xbf16>
    %74 = vector.extract_strided_slice %63 {offsets = [4, 0], sizes = [51, 12], strides = [1, 1]} : vector<55x12xf32> to vector<51x12xf32>
    %75 = arith.truncf %74 : vector<51x12xf32> to vector<51x12xbf16>
    %cst_30 = arith.constant dense<0.000000e+00> : vector<51x12xf32>
    %76 = tpu.matmul %75, %73, %cst_30 {dimension_numbers = #tpu.dot_dimension_numbers<[1], [0], [0], [1], [0, 0, 1, 1], [], []>} : vector<51x12xbf16>, vector<12x12xbf16>, vector<51x12xf32> -> vector<51x12xf32>
    %77 = arith.addf %72, %76 : vector<51x12xf32>
    %c240 = arith.constant 240 : index
    %c0_31 = arith.constant 0 : index
    %78 = vector.load %arg1[%c240, %c0_31] : memref<400x128xbf16, #tpu.memory_space<vmem>>, vector<1x12xbf16>
    %79 = arith.extf %78 : vector<1x12xbf16> to vector<1x12xf32>
    %80 = vector.broadcast %79 : vector<1x12xf32> to vector<51x12xf32>
    %81 = arith.addf %77, %80 : vector<51x12xf32>
    %cst_32 = arith.constant 0.000000e+00 : f32
    %82 = vector.broadcast %cst_32 : f32 to vector<51x12xf32>
    %83 = arith.maximumf %81, %82 : vector<51x12xf32>
    %84 = vector.extract_strided_slice %83 {offsets = [0, 0], sizes = [49, 12], strides = [1, 1]} : vector<51x12xf32> to vector<49x12xf32>
    %85 = vector.extract_strided_slice %83 {offsets = [2, 0], sizes = [49, 12], strides = [1, 1]} : vector<51x12xf32> to vector<49x12xf32>
    %86 = arith.maximumf %84, %85 : vector<49x12xf32>
    %c256 = arith.constant 256 : index
    %c0_33 = arith.constant 0 : index
    %87 = vector.load %arg1[%c256, %c0_33] : memref<400x128xbf16, #tpu.memory_space<vmem>>, vector<12x32xbf16>
    %88 = vector.extract_strided_slice %86 {offsets = [0, 0], sizes = [33, 12], strides = [1, 1]} : vector<49x12xf32> to vector<33x12xf32>
    %89 = arith.truncf %88 : vector<33x12xf32> to vector<33x12xbf16>
    %cst_34 = arith.constant dense<0.000000e+00> : vector<33x32xf32>
    %90 = tpu.matmul %89, %87, %cst_34 {dimension_numbers = #tpu.dot_dimension_numbers<[1], [0], [0], [1], [0, 0, 1, 1], [], []>} : vector<33x12xbf16>, vector<12x32xbf16>, vector<33x32xf32> -> vector<33x32xf32>
    %c272 = arith.constant 272 : index
    %c0_35 = arith.constant 0 : index
    %91 = vector.load %arg1[%c272, %c0_35] : memref<400x128xbf16, #tpu.memory_space<vmem>>, vector<12x32xbf16>
    %92 = vector.extract_strided_slice %86 {offsets = [4, 0], sizes = [33, 12], strides = [1, 1]} : vector<49x12xf32> to vector<33x12xf32>
    %93 = arith.truncf %92 : vector<33x12xf32> to vector<33x12xbf16>
    %cst_36 = arith.constant dense<0.000000e+00> : vector<33x32xf32>
    %94 = tpu.matmul %93, %91, %cst_36 {dimension_numbers = #tpu.dot_dimension_numbers<[1], [0], [0], [1], [0, 0, 1, 1], [], []>} : vector<33x12xbf16>, vector<12x32xbf16>, vector<33x32xf32> -> vector<33x32xf32>
    %95 = arith.addf %90, %94 : vector<33x32xf32>
    %c288 = arith.constant 288 : index
    %c0_37 = arith.constant 0 : index
    %96 = vector.load %arg1[%c288, %c0_37] : memref<400x128xbf16, #tpu.memory_space<vmem>>, vector<12x32xbf16>
    %97 = vector.extract_strided_slice %86 {offsets = [8, 0], sizes = [33, 12], strides = [1, 1]} : vector<49x12xf32> to vector<33x12xf32>
    %98 = arith.truncf %97 : vector<33x12xf32> to vector<33x12xbf16>
    %cst_38 = arith.constant dense<0.000000e+00> : vector<33x32xf32>
    %99 = tpu.matmul %98, %96, %cst_38 {dimension_numbers = #tpu.dot_dimension_numbers<[1], [0], [0], [1], [0, 0, 1, 1], [], []>} : vector<33x12xbf16>, vector<12x32xbf16>, vector<33x32xf32> -> vector<33x32xf32>
    %100 = arith.addf %95, %99 : vector<33x32xf32>
    %c304 = arith.constant 304 : index
    %c0_39 = arith.constant 0 : index
    %101 = vector.load %arg1[%c304, %c0_39] : memref<400x128xbf16, #tpu.memory_space<vmem>>, vector<12x32xbf16>
    %102 = vector.extract_strided_slice %86 {offsets = [12, 0], sizes = [33, 12], strides = [1, 1]} : vector<49x12xf32> to vector<33x12xf32>
    %103 = arith.truncf %102 : vector<33x12xf32> to vector<33x12xbf16>
    %cst_40 = arith.constant dense<0.000000e+00> : vector<33x32xf32>
    %104 = tpu.matmul %103, %101, %cst_40 {dimension_numbers = #tpu.dot_dimension_numbers<[1], [0], [0], [1], [0, 0, 1, 1], [], []>} : vector<33x12xbf16>, vector<12x32xbf16>, vector<33x32xf32> -> vector<33x32xf32>
    %105 = arith.addf %100, %104 : vector<33x32xf32>
    %c320 = arith.constant 320 : index
    %c0_41 = arith.constant 0 : index
    %106 = vector.load %arg1[%c320, %c0_41] : memref<400x128xbf16, #tpu.memory_space<vmem>>, vector<12x32xbf16>
    %107 = vector.extract_strided_slice %86 {offsets = [16, 0], sizes = [33, 12], strides = [1, 1]} : vector<49x12xf32> to vector<33x12xf32>
    %108 = arith.truncf %107 : vector<33x12xf32> to vector<33x12xbf16>
    %cst_42 = arith.constant dense<0.000000e+00> : vector<33x32xf32>
    %109 = tpu.matmul %108, %106, %cst_42 {dimension_numbers = #tpu.dot_dimension_numbers<[1], [0], [0], [1], [0, 0, 1, 1], [], []>} : vector<33x12xbf16>, vector<12x32xbf16>, vector<33x32xf32> -> vector<33x32xf32>
    %110 = arith.addf %105, %109 : vector<33x32xf32>
    %c336 = arith.constant 336 : index
    %c0_43 = arith.constant 0 : index
    %111 = vector.load %arg1[%c336, %c0_43] : memref<400x128xbf16, #tpu.memory_space<vmem>>, vector<1x32xbf16>
    %112 = arith.extf %111 : vector<1x32xbf16> to vector<1x32xf32>
    %113 = vector.broadcast %112 : vector<1x32xf32> to vector<33x32xf32>
    %114 = arith.addf %110, %113 : vector<33x32xf32>
    %cst_44 = arith.constant 0.000000e+00 : f32
    %115 = vector.broadcast %cst_44 : f32 to vector<33x32xf32>
    %116 = arith.maximumf %114, %115 : vector<33x32xf32>
    %117 = vector.extract_strided_slice %116 {offsets = [0, 0], sizes = [1, 32], strides = [1, 1]} : vector<33x32xf32> to vector<1x32xf32>
    %118 = vector.extract_strided_slice %116 {offsets = [32, 0], sizes = [1, 32], strides = [1, 1]} : vector<33x32xf32> to vector<1x32xf32>
    %119 = tpu.concatenate %117, %118 in 0 : vector<1x32xf32>, vector<1x32xf32> -> vector<2x32xf32>
    %c352 = arith.constant 352 : index
    %c0_45 = arith.constant 0 : index
    %120 = vector.load %arg1[%c352, %c0_45] : memref<400x128xbf16, #tpu.memory_space<vmem>>, vector<32x128xbf16>
    %c384 = arith.constant 384 : index
    %c0_46 = arith.constant 0 : index
    %121 = vector.load %arg1[%c384, %c0_46] : memref<400x128xbf16, #tpu.memory_space<vmem>>, vector<1x128xbf16>
    %122 = arith.extf %121 : vector<1x128xbf16> to vector<1x128xf32>
    %123 = arith.truncf %119 : vector<2x32xf32> to vector<2x32xbf16>
    %cst_47 = arith.constant dense<0.000000e+00> : vector<2x128xf32>
    %124 = tpu.matmul %123, %120, %cst_47 {dimension_numbers = #tpu.dot_dimension_numbers<[1], [0], [0], [1], [0, 0, 1, 1], [], []>} : vector<2x32xbf16>, vector<32x128xbf16>, vector<2x128xf32> -> vector<2x128xf32>
    %125 = vector.broadcast %122 : vector<1x128xf32> to vector<2x128xf32>
    %126 = arith.addf %124, %125 : vector<2x128xf32>
    %127 = vector.extract_strided_slice %126 {offsets = [0, 0], sizes = [2, 9], strides = [1, 1]} : vector<2x128xf32> to vector<2x9xf32>
    %cst_48 = arith.constant dense<0xFF800000> : vector<2xf32>
    %128 = vector.multi_reduction <maximumf>, %127, %cst_48 [1] : vector<2x9xf32> to vector<2xf32>
    %129 = vector.shape_cast %128 : vector<2xf32> to vector<2x1xf32>
    %130 = vector.broadcast %129 : vector<2x1xf32> to vector<2x128xf32>
    %131 = arith.subf %126, %130 : vector<2x128xf32>
    %132 = math.exp %131 : vector<2x128xf32>
    %133 = vector.extract_strided_slice %132 {offsets = [0, 0], sizes = [2, 9], strides = [1, 1]} : vector<2x128xf32> to vector<2x9xf32>
    %cst_49 = arith.constant dense<0.000000e+00> : vector<2xf32>
    %134 = vector.multi_reduction <add>, %133, %cst_49 [1] : vector<2x9xf32> to vector<2xf32>
    %135 = vector.shape_cast %134 : vector<2xf32> to vector<2x1xf32>
    %136 = tpu.reciprocal %135 {approx = true} : vector<2x1xf32> -> vector<2x1xf32>
    %137 = tpu.iota {dimensions = array<i32: 1>} : vector<2x128xi32>
    %c9_i32 = arith.constant 9 : i32
    %138 = vector.broadcast %c9_i32 : i32 to vector<2x128xi32>
    %139 = arith.cmpi slt, %137, %138 : vector<2x128xi32>
    %140 = vector.broadcast %136 : vector<2x1xf32> to vector<2x128xf32>
    %141 = arith.mulf %132, %140 : vector<2x128xf32>
    %142 = arith.select %139, %141, %126 : vector<2x128xi1>, vector<2x128xf32>
    %c0_50 = arith.constant 0 : index
    %c0_51 = arith.constant 0 : index
    %143 = vector.load %arg2[%c0_50, %c0_51] : memref<2x128xf32, #tpu.memory_space<vmem>>, vector<2x128xf32>
    tpu.vector_store %arg2[%c0_50, %c0_51], %142 {strides = array<i32>} : memref<2x128xf32, #tpu.memory_space<vmem>>, vector<2x128xf32>,
    return
  }
}

</mosaic_0001>

<llo_original>
// kernel: bad_model_forward.1
$region0: #{bad_model_forward.1}
  #allocation0 [shape = 'u32[]', space=smem, size = 0x4, offset = 0x4, fixed_abs, tag = 'smem constant byte address 0x4 - core index']
  #allocation1 [shape = 'u32[144,128]{1,0:T(1,128)}', space=vmem, size = 0x12000, scoped, tag = 'internal scratch']
  %s0 = inlined_call_operand.vmem [shape: f32[64,6], index: 0, kind: input, shape index: {}]
  %s1 = inlined_call_operand.vmem [shape: bf16[400,128], index: 1, kind: input, shape index: {}]
  %s2 = inlined_call_operand.hbm [shape: f32[2,128], index: 2, kind: output, shape index: {}]
  %s3 = sld [smem:[#allocation0]]
  $region18: #{bad_model_forward.1} parent=0
    _
  %s5 = ssub.s32 1, %s3
  %s6 = scalar_select 0, %s5, %s3
  $region1: #{bad_model_forward.1} parent=0
    #allocation2 [shape = 'u8[1024]{0}', space=vmem, size = 0x400, scoped, tag = 'output window, operand 0, single buffered']
    #allocation3 [shape = 's32[1]{0}', space=sflag, size = 0x4, scoped, tag = 'scoped memory for bad_model_forward.1']
    %7 = vsyncpa [#allocation3], 0
    // Predicated region
    $region2: #{bad_model_forward.1} parent=1 // pred_check
      _
    $region3: #{bad_model_forward.1} parent=1 // pred_check_branch
      %9 = sbr.rel (0) target = $region5
    $region4: #{bad_model_forward.1} parent=1 // pred_region
      _
    $region5: #{bad_model_forward.1} parent=1 // pred_fallthru
      _
    // Predicated region
    $region6: #{bad_model_forward.1} parent=1 // pred_check
      _
    $region7: #{bad_model_forward.1} parent=1 // pred_check_branch
      %11 = sbr.rel (0) target = $region9
    $region8: #{bad_model_forward.1} parent=1 // pred_region
      _
    $region9: #{bad_model_forward.1} parent=1 // pred_fallthru
      _
    %v13 = vld [vmem:[%s0] sm:$0xff]
    %v14 = vld [vmem:[%s0 + $0x8] sm:$0xff]
    %v15 = vld [vmem:[%s0 + $0x10] sm:$0xff]
    %v16 = vld [vmem:[%s0 + $0x18] sm:$0xff]
    %v17 = vld [vmem:[%s0 + $0x20] sm:$0xff]
    %v18 = vld [vmem:[%s0 + $0x28] sm:$0xff]
    %v19 = vld [vmem:[%s0 + $0x30] sm:$0xff]
    %v20 = vld [vmem:[%s0 + $0x38] sm:$0xff]
    %v21 = vld [vmem:[%s1] sm:$0x7]
    %v22 = vpack.c.bf16 %v14, %v13
    %v23 = vpack.c.bf16 %v16, %v15
    %v24 = vpack.c.bf16 %v18, %v17
    %v25 = vpack.c.bf16 %v20, %v19
    %v26 = vld [vmem:[%s1 + $0x8] sm:$0x7]
    %vm27 = vsmask.f32 7424
    %v29 = vshrl.u32 %v22, 16
    %v31 = vshll.u32 %v22, 16
    %v33 = vrot.slane %v31, 1
    %v34 = vor.u32 %v29, %v33
    %v36 = vshll.u32 %v23, 16
    %v38 = vrot.slane %v36, 1
    %v39 = vsel %vm27, %v34, %v38
    %v40 = vshrl.u32 %v23, 16
    %v42 = vor.u32 %v40, %v38
    %v44 = vshll.u32 %v24, 16
    %v46 = vrot.slane %v44, 1
    %v47 = vsel %vm27, %v42, %v46
    %v48 = vshrl.u32 %v24, 16
    %v50 = vor.u32 %v48, %v46
    %v52 = vshll.u32 %v25, 16
    %v54 = vrot.slane %v52, 1
    %v55 = vsel %vm27, %v50, %v54
    %v56 = vshrl.u32 %v25, 16
    %v58 = vor.u32 %v56, %v54
    %vm59 = vcmask 48128
    %v61 = vsel %vm59, %v39, 0
    %v64 = vsel %vm59, %v47, 0
    %v67 = vsel %vm59, %v55, 0
    %v70 = vsel %vm59, %v58, 0
    %vm72 = vcmask 1042432
    %v74 = vsel %vm72, %v26, 0
    %76 = vmatprep.subr.bf16.mxu0 0
    %77 = vmatpush1.bf16.msra.mxu0 %v74
    %78 = vmatprep.subr.bf16.mxu0 0
    %79 = vmatpush1.bf16.msra.mxu0 0
    %80 = vmatprep.subr.bf16.mxu0 0
    %81 = vmatpush1.bf16.msra.mxu0 0
    %82 = vmatprep.subr.bf16.mxu0 0
    %83 = vmatpush1.bf16.msra.mxu0 0
    %84 = vmatprep.subr.bf16.mxu0 0
    %85 = vmatpush1.bf16.msra.mxu0 0
    %86 = vmatprep.subr.bf16.mxu0 0
    %87 = vmatpush1.bf16.msra.mxu0 0
    %88 = vmatprep.subr.bf16.mxu0 0
    %89 = vmatpush1.bf16.msra.mxu0 0
    %90 = vmatprep.subr.bf16.mxu0 0
    %91 = vmatpush1.bf16.msra.mxu0 0
    %92 = vmatprep.subr.bf16.mxu0 0
    %93 = vmatpush1.bf16.msra.mxu0 0
    %94 = vmatprep.subr.bf16.mxu0 0
    %95 = vmatpush1.bf16.msra.mxu0 0
    %96 = vmatprep.subr.bf16.mxu0 0
    %97 = vmatpush1.bf16.msra.mxu0 0
    %98 = vmatprep.subr.bf16.mxu0 0
    %99 = vmatpush1.bf16.msra.mxu0 0
    %100 = vmatprep.subr.bf16.mxu0 0
    %101 = vmatpush1.bf16.msra.mxu0 0
    %102 = vmatprep.subr.bf16.mxu0 0
    %103 = vmatpush1.bf16.msra.mxu0 0
    %104 = vmatprep.subr.bf16.mxu0 0
    %105 = vmatpush1.bf16.msra.mxu0 0
    %106 = vmatprep.subr.bf16.mxu0 0
    %107 = vmatpush1.bf16.msra.mxu0 0
    %108 = vmatprep.mubr.bf16.mxu0 0
    %109 = vmatmul.mubr.bf16.gmra.mrb[0].mxu0 %v61
    %v110 = vpop.f32.mrb[0].mxu0
    %v111 = vadd.f32 0.0, %v110
    %v112 = vpop.f32.mrb[0].mxu0
    %v113 = vpop.f32.mrb[0].mxu0
    %v114 = vadd.f32 0.0, %v113
    %v115 = vpop.f32.mrb[0].mxu0
    %116 = vmatprep.mubr.bf16.mxu0 0
    %117 = vmatmul.mubr.bf16.gmra.mrb[0].mxu0 %v64
    %v118 = vpop.f32.mrb[0].mxu0
    %v119 = vadd.f32 0.0, %v118
    %v120 = vpop.f32.mrb[0].mxu0
    %v121 = vpop.f32.mrb[0].mxu0
    %v122 = vadd.f32 0.0, %v121
    %v123 = vpop.f32.mrb[0].mxu0
    %124 = vmatprep.mubr.bf16.mxu0 0
    %125 = vmatmul.mubr.bf16.gmra.mrb[0].mxu0 %v67
    %v126 = vpop.f32.mrb[0].mxu0
    %v127 = vadd.f32 0.0, %v126
    %v128 = vpop.f32.mrb[0].mxu0
    %v129 = vpop.f32.mrb[0].mxu0
    %v130 = vadd.f32 0.0, %v129
    %v131 = vpop.f32.mrb[0].mxu0
    %132 = vmatprep.mubr.bf16.mxu0 0
    %133 = vmatmul.mubr.bf16.gmra.mrb[0].mxu0 %v70
    %v134 = vpop.f32.mrb[0].mxu0
    %v135 = vadd.f32 0.0, %v134
    %v136 = vpop.f32.mrb[0].mxu0
    %v137 = vpop.f32.mrb[0].mxu0
    %v138 = vadd.f32 0.0, %v137
    %v139 = vpop.f32.mrb[0].mxu0
    %140 = vdwg.mxu0
    %v141 = vsel %vm59, %v22, 0
    %v143 = vsel %vm59, %v23, 0
    %v145 = vsel %vm59, %v24, 0
    %v147 = vsel %vm59, %v25, 0
    %v150 = vsel %vm72, %v21, 0
    %152 = vmatprep.subr.bf16.mxu0 0
    %153 = vmatpush1.bf16.msra.mxu0 %v150
    %154 = vmatprep.subr.bf16.mxu0 0
    %155 = vmatpush1.bf16.msra.mxu0 0
    %156 = vmatprep.subr.bf16.mxu0 0
    %157 = vmatpush1.bf16.msra.mxu0 0
    %158 = vmatprep.subr.bf16.mxu0 0
    %159 = vmatpush1.bf16.msra.mxu0 0
    %160 = vmatprep.subr.bf16.mxu0 0
    %161 = vmatpush1.bf16.msra.mxu0 0
    %162 = vmatprep.subr.bf16.mxu0 0
    %163 = vmatpush1.bf16.msra.mxu0 0
    %164 = vmatprep.subr.bf16.mxu0 0
    %165 = vmatpush1.bf16.msra.mxu0 0
    %166 = vmatprep.subr.bf16.mxu0 0
    %167 = vmatpush1.bf16.msra.mxu0 0
    %168 = vmatprep.subr.bf16.mxu0 0
    %169 = vmatpush1.bf16.msra.mxu0 0
    %170 = vmatprep.subr.bf16.mxu0 0
    %171 = vmatpush1.bf16.msra.mxu0 0
    %172 = vmatprep.subr.bf16.mxu0 0
    %173 = vmatpush1.bf16.msra.mxu0 0
    %174 = vmatprep.subr.bf16.mxu0 0
    %175 = vmatpush1.bf16.msra.mxu0 0
    %176 = vmatprep.subr.bf16.mxu0 0
    %177 = vmatpush1.bf16.msra.mxu0 0
    %178 = vmatprep.subr.bf16.mxu0 0
    %179 = vmatpush1.bf16.msra.mxu0 0
    %180 = vmatprep.subr.bf16.mxu0 0
    %181 = vmatpush1.bf16.msra.mxu0 0
    %182 = vmatprep.subr.bf16.mxu0 0
    %183 = vmatpush1.bf16.msra.mxu0 0
    %184 = vmatprep.mubr.bf16.mxu0 0
    %185 = vmatmul.mubr.bf16.gmra.mrb[0].mxu0 %v141
    %v186 = vpop.f32.mrb[0].mxu0
    %v187 = vadd.f32 %v111, %v186
    %v188 = vpop.f32.mrb[0].mxu0
    %v189 = vpop.f32.mrb[0].mxu0
    %v190 = vadd.f32 %v114, %v189
    %v191 = vpop.f32.mrb[0].mxu0
    %192 = vmatprep.mubr.bf16.mxu0 0
    %193 = vmatmul.mubr.bf16.gmra.mrb[0].mxu0 %v143
    %v194 = vpop.f32.mrb[0].mxu0
    %v195 = vadd.f32 %v119, %v194
    %v196 = vpop.f32.mrb[0].mxu0
    %v197 = vpop.f32.mrb[0].mxu0
    %v198 = vadd.f32 %v122, %v197
    %v199 = vpop.f32.mrb[0].mxu0
    %200 = vmatprep.mubr.bf16.mxu0 0
    %201 = vmatmul.mubr.bf16.gmra.mrb[0].mxu0 %v145
    %v202 = vpop.f32.mrb[0].mxu0
    %v203 = vadd.f32 %v127, %v202
    %v204 = vpop.f32.mrb[0].mxu0
    %v205 = vpop.f32.mrb[0].mxu0
    %v206 = vadd.f32 %v130, %v205
    %v207 = vpop.f32.mrb[0].mxu0
    %208 = vmatprep.mubr.bf16.mxu0 0
    %209 = vmatmul.mubr.bf16.gmra.mrb[0].mxu0 %v147
    %v210 = vpop.f32.mrb[0].mxu0
    %v211 = vadd.f32 %v135, %v210
    %v212 = vpop.f32.mrb[0].mxu0
    %v213 = vpop.f32.mrb[0].mxu0
    %v214 = vadd.f32 %v138, %v213
    %v215 = vpop.f32.mrb[0].mxu0
    %216 = vdwg.mxu0
    %v217 = vld [vmem:[%s1 + $0x10] sm:$0x7]
    %vm222 = vcmask 1046528
    %v223 = vrot.slane %v22, 1
    %v224 = vrot.slane %v23, 1
    %v225 = vsel %vm222, %v223, %v224
    %v226 = vrot.slane %v24, 1
    %v227 = vsel %vm222, %v224, %v226
    %v228 = vrot.slane %v25, 1
    %v229 = vsel %vm222, %v226, %v228
    %v231 = vsel %vm59, %v225, 0
    %v234 = vsel %vm59, %v227, 0
    %v237 = vsel %vm59, %v229, 0
    %v240 = vsel %vm59, %v228, 0
    %v243 = vsel %vm72, %v217, 0
    %245 = vmatprep.subr.bf16.mxu0 0
    %246 = vmatpush1.bf16.msra.mxu0 %v243
    %247 = vmatprep.subr.bf16.mxu0 0
    %248 = vmatpush1.bf16.msra.mxu0 0
    %249 = vmatprep.subr.bf16.mxu0 0
    %250 = vmatpush1.bf16.msra.mxu0 0
    %251 = vmatprep.subr.bf16.mxu0 0
    %252 = vmatpush1.bf16.msra.mxu0 0
    %253 = vmatprep.subr.bf16.mxu0 0
    %254 = vmatpush1.bf16.msra.mxu0 0
    %255 = vmatprep.subr.bf16.mxu0 0
    %256 = vmatpush1.bf16.msra.mxu0 0
    %257 = vmatprep.subr.bf16.mxu0 0
    %258 = vmatpush1.bf16.msra.mxu0 0
    %259 = vmatprep.subr.bf16.mxu0 0
    %260 = vmatpush1.bf16.msra.mxu0 0
    %261 = vmatprep.subr.bf16.mxu0 0
    %262 = vmatpush1.bf16.msra.mxu0 0
    %263 = vmatprep.subr.bf16.mxu0 0
    %264 = vmatpush1.bf16.msra.mxu0 0
    %265 = vmatprep.subr.bf16.mxu0 0
    %266 = vmatpush1.bf16.msra.mxu0 0
    %267 = vmatprep.subr.bf16.mxu0 0
    %268 = vmatpush1.bf16.msra.mxu0 0
    %269 = vmatprep.subr.bf16.mxu0 0
    %270 = vmatpush1.bf16.msra.mxu0 0
    %271 = vmatprep.subr.bf16.mxu0 0
    %272 = vmatpush1.bf16.msra.mxu0 0
    %273 = vmatprep.subr.bf16.mxu0 0
    %274 = vmatpush1.bf16.msra.mxu0 0
    %275 = vmatprep.subr.bf16.mxu0 0
    %276 = vmatpush1.bf16.msra.mxu0 0
    %277 = vmatprep.mubr.bf16.mxu0 0
    %278 = vmatmul.mubr.bf16.gmra.mrb[0].mxu0 %v231
    %v279 = vpop.f32.mrb[0].mxu0
    %v280 = vadd.f32 0.0, %v279
    %v281 = vpop.f32.mrb[0].mxu0
    %v282 = vpop.f32.mrb[0].mxu0
    %v283 = vadd.f32 0.0, %v282
    %v284 = vpop.f32.mrb[0].mxu0
    %285 = vmatprep.mubr.bf16.mxu0 0
    %286 = vmatmul.mubr.bf16.gmra.mrb[0].mxu0 %v234
    %v287 = vpop.f32.mrb[0].mxu0
    %v288 = vadd.f32 0.0, %v287
    %v289 = vpop.f32.mrb[0].mxu0
    %v290 = vpop.f32.mrb[0].mxu0
    %v291 = vadd.f32 0.0, %v290
    %v292 = vpop.f32.mrb[0].mxu0
    %293 = vmatprep.mubr.bf16.mxu0 0
    %294 = vmatmul.mubr.bf16.gmra.mrb[0].mxu0 %v237
    %v295 = vpop.f32.mrb[0].mxu0
    %v296 = vadd.f32 0.0, %v295
    %v297 = vpop.f32.mrb[0].mxu0
    %v298 = vpop.f32.mrb[0].mxu0
    %v299 = vadd.f32 0.0, %v298
    %v300 = vpop.f32.mrb[0].mxu0
    %301 = vmatprep.mubr.bf16.mxu0 0
    %302 = vmatmul.mubr.bf16.gmra.mrb[0].mxu0 %v240
    %v303 = vpop.f32.mrb[0].mxu0
    %v304 = vadd.f32 0.0, %v303
    %v305 = vpop.f32.mrb[0].mxu0
    %v306 = vpop.f32.mrb[0].mxu0
    %v307 = vadd.f32 0.0, %v306
    %v308 = vpop.f32.mrb[0].mxu0
    %309 = vdwg.mxu0
    %v310 = vadd.f32 %v187, %v280
    %v311 = vadd.f32 %v190, %v283
    %v312 = vadd.f32 %v195, %v288
    %v313 = vadd.f32 %v198, %v291
    %v314 = vadd.f32 %v203, %v296
    %v315 = vadd.f32 %v206, %v299
    %v316 = vadd.f32 %v211, %v304
    %v317 = vadd.f32 %v214, %v307
    %v318 = vld [vmem:[%s1 + $0x18] sm:$0x1]
    %v319 = vunpack.c.l.bf16 %v318
    %v320 = vlaneseq
    %v321 = vshrl.u32 %v320, 7
    %v322 = vsub.s32 0, %v321
    %v323 = vrot.slane %v319, %v322
    %v324 = vadd.f32 %v310, %v323
    %v325 = vadd.f32 %v311, %v323
    %v326 = vadd.f32 %v312, %v323
    %v327 = vadd.f32 %v313, %v323
    %v328 = vadd.f32 %v314, %v323
    %v329 = vadd.f32 %v315, %v323
    %v330 = vadd.f32 %v316, %v323
    %v331 = vadd.f32 %v317, %v323
    %v332 = vmax.f32 %v324, 0.0
    %v333 = vmax.f32 %v325, 0.0
    %v334 = vmax.f32 %v326, 0.0
    %v335 = vmax.f32 %v327, 0.0
    %v336 = vmax.f32 %v328, 0.0
    %v337 = vmax.f32 %v329, 0.0
    %v338 = vmax.f32 %v330, 0.0
    %v339 = vmax.f32 %v331, 0.0
    %v340 = vld [vmem:[%s1 + $0x20] sm:$0x7]
    %v341 = vpack.c.bf16 %v333, %v332
    %v342 = vpack.c.bf16 %v335, %v334
    %v343 = vpack.c.bf16 %v337, %v336
    %v344 = vpack.c.bf16 %v339, %v338
    %v345 = vld [vmem:[%s1 + $0x28] sm:$0x7]
    %v347 = vshrl.u32 %v341, 16
    %v349 = vshll.u32 %v341, 16
    %v351 = vrot.slane %v349, 1
    %v352 = vor.u32 %v347, %v351
    %v354 = vshll.u32 %v342, 16
    %v356 = vrot.slane %v354, 1
    %v357 = vsel %vm27, %v352, %v356
    %v358 = vshrl.u32 %v342, 16
    %v360 = vor.u32 %v358, %v356
    %v362 = vshll.u32 %v343, 16
    %v364 = vrot.slane %v362, 1
    %v365 = vsel %vm27, %v360, %v364
    %v366 = vshrl.u32 %v343, 16
    %v368 = vor.u32 %v366, %v364
    %v370 = vshll.u32 %v344, 16
    %v372 = vrot.slane %v370, 1
    %v373 = vsel %vm27, %v368, %v372
    %v374 = vshrl.u32 %v344, 16
    %v376 = vor.u32 %v374, %v372
    %v378 = vsel %vm59, %v357, 0
    %v381 = vsel %vm59, %v365, 0
    %v384 = vsel %vm59, %v373, 0
    %v387 = vsel %vm59, %v376, 0
    %v390 = vsel %vm72, %v345, 0
    %392 = vmatprep.subr.bf16.mxu0 0
    %393 = vmatpush1.bf16.msra.mxu0 %v390
    %394 = vmatprep.subr.bf16.mxu0 0
    %395 = vmatpush1.bf16.msra.mxu0 0
    %396 = vmatprep.subr.bf16.mxu0 0
    %397 = vmatpush1.bf16.msra.mxu0 0
    %398 = vmatprep.subr.bf16.mxu0 0
    %399 = vmatpush1.bf16.msra.mxu0 0
    %400 = vmatprep.subr.bf16.mxu0 0
    %401 = vmatpush1.bf16.msra.mxu0 0
    %402 = vmatprep.subr.bf16.mxu0 0
    %403 = vmatpush1.bf16.msra.mxu0 0
    %404 = vmatprep.subr.bf16.mxu0 0
    %405 = vmatpush1.bf16.msra.mxu0 0
    %406 = vmatprep.subr.bf16.mxu0 0
    %407 = vmatpush1.bf16.msra.mxu0 0
    %408 = vmatprep.subr.bf16.mxu0 0
    %409 = vmatpush1.bf16.msra.mxu0 0
    %410 = vmatprep.subr.bf16.mxu0 0
    %411 = vmatpush1.bf16.msra.mxu0 0
    %412 = vmatprep.subr.bf16.mxu0 0
    %413 = vmatpush1.bf16.msra.mxu0 0
    %414 = vmatprep.subr.bf16.mxu0 0
    %415 = vmatpush1.bf16.msra.mxu0 0
    %416 = vmatprep.subr.bf16.mxu0 0
    %417 = vmatpush1.bf16.msra.mxu0 0
    %418 = vmatprep.subr.bf16.mxu0 0
    %419 = vmatpush1.bf16.msra.mxu0 0
    %420 = vmatprep.subr.bf16.mxu0 0
    %421 = vmatpush1.bf16.msra.mxu0 0
    %422 = vmatprep.subr.bf16.mxu0 0
    %423 = vmatpush1.bf16.msra.mxu0 0
    %424 = vmatprep.mubr.bf16.mxu0 0
    %425 = vmatmul.mubr.bf16.gmra.mrb[0].mxu0 %v378
    %v426 = vpop.f32.mrb[0].mxu0
    %v427 = vadd.f32 0.0, %v426
    %v428 = vpop.f32.mrb[0].mxu0
    %v429 = vpop.f32.mrb[0].mxu0
    %v430 = vadd.f32 0.0, %v429
    %v431 = vpop.f32.mrb[0].mxu0
    %432 = vmatprep.mubr.bf16.mxu0 0
    %433 = vmatmul.mubr.bf16.gmra.mrb[0].mxu0 %v381
    %v434 = vpop.f32.mrb[0].mxu0
    %v435 = vadd.f32 0.0, %v434
    %v436 = vpop.f32.mrb[0].mxu0
    %v437 = vpop.f32.mrb[0].mxu0
    %v438 = vadd.f32 0.0, %v437
    %v439 = vpop.f32.mrb[0].mxu0
    %440 = vmatprep.mubr.bf16.mxu0 0
    %441 = vmatmul.mubr.bf16.gmra.mrb[0].mxu0 %v384
    %v442 = vpop.f32.mrb[0].mxu0
    %v443 = vadd.f32 0.0, %v442
    %v444 = vpop.f32.mrb[0].mxu0
    %v445 = vpop.f32.mrb[0].mxu0
    %v446 = vadd.f32 0.0, %v445
    %v447 = vpop.f32.mrb[0].mxu0
    %448 = vmatprep.mubr.bf16.mxu0 0
    %449 = vmatmul.mubr.bf16.gmra.mrb[0].mxu0 %v387
    %v450 = vpop.f32.mrb[0].mxu0
    %v451 = vadd.f32 0.0, %v450
    %v452 = vpop.f32.mrb[0].mxu0
    %v453 = vpop.f32.mrb[0].mxu0
    %v454 = vadd.f32 0.0, %v453
    %v455 = vpop.f32.mrb[0].mxu0
    %456 = vdwg.mxu0
    %v457 = vsel %vm59, %v341, 0
    %v459 = vsel %vm59, %v342, 0
    %v461 = vsel %vm59, %v343, 0
    %v463 = vsel %vm59, %v344, 0
    %v466 = vsel %vm72, %v340, 0
    %468 = vmatprep.subr.bf16.mxu0 0
    %469 = vmatpush1.bf16.msra.mxu0 %v466
    %470 = vmatprep.subr.bf16.mxu0 0
    %471 = vmatpush1.bf16.msra.mxu0 0
    %472 = vmatprep.subr.bf16.mxu0 0
    %473 = vmatpush1.bf16.msra.mxu0 0
    %474 = vmatprep.subr.bf16.mxu0 0
    %475 = vmatpush1.bf16.msra.mxu0 0
    %476 = vmatprep.subr.bf16.mxu0 0
    %477 = vmatpush1.bf16.msra.mxu0 0
    %478 = vmatprep.subr.bf16.mxu0 0
    %479 = vmatpush1.bf16.msra.mxu0 0
    %480 = vmatprep.subr.bf16.mxu0 0
    %481 = vmatpush1.bf16.msra.mxu0 0
    %482 = vmatprep.subr.bf16.mxu0 0
    %483 = vmatpush1.bf16.msra.mxu0 0
    %484 = vmatprep.subr.bf16.mxu0 0
    %485 = vmatpush1.bf16.msra.mxu0 0
    %486 = vmatprep.subr.bf16.mxu0 0
    %487 = vmatpush1.bf16.msra.mxu0 0
    %488 = vmatprep.subr.bf16.mxu0 0
    %489 = vmatpush1.bf16.msra.mxu0 0
    %490 = vmatprep.subr.bf16.mxu0 0
    %491 = vmatpush1.bf16.msra.mxu0 0
    %492 = vmatprep.subr.bf16.mxu0 0
    %493 = vmatpush1.bf16.msra.mxu0 0
    %494 = vmatprep.subr.bf16.mxu0 0
    %495 = vmatpush1.bf16.msra.mxu0 0
    %496 = vmatprep.subr.bf16.mxu0 0
    %497 = vmatpush1.bf16.msra.mxu0 0
    %498 = vmatprep.subr.bf16.mxu0 0
    %499 = vmatpush1.bf16.msra.mxu0 0
    %500 = vmatprep.mubr.bf16.mxu0 0
    %501 = vmatmul.mubr.bf16.gmra.mrb[0].mxu0 %v457
    %v502 = vpop.f32.mrb[0].mxu0
    %v503 = vadd.f32 %v427, %v502
    %v504 = vpop.f32.mrb[0].mxu0
    %v505 = vpop.f32.mrb[0].mxu0
    %v506 = vadd.f32 %v430, %v505
    %v507 = vpop.f32.mrb[0].mxu0
    %508 = vmatprep.mubr.bf16.mxu0 0
    %509 = vmatmul.mubr.bf16.gmra.mrb[0].mxu0 %v459
    %v510 = vpop.f32.mrb[0].mxu0
    %v511 = vadd.f32 %v435, %v510
    %v512 = vpop.f32.mrb[0].mxu0
    %v513 = vpop.f32.mrb[0].mxu0
    %v514 = vadd.f32 %v438, %v513
    %v515 = vpop.f32.mrb[0].mxu0
    %516 = vmatprep.mubr.bf16.mxu0 0
    %517 = vmatmul.mubr.bf16.gmra.mrb[0].mxu0 %v461
    %v518 = vpop.f32.mrb[0].mxu0
    %v519 = vadd.f32 %v443, %v518
    %v520 = vpop.f32.mrb[0].mxu0
    %v521 = vpop.f32.mrb[0].mxu0
    %v522 = vadd.f32 %v446, %v521
    %v523 = vpop.f32.mrb[0].mxu0
    %524 = vmatprep.mubr.bf16.mxu0 0
    %525 = vmatmul.mubr.bf16.gmra.mrb[0].mxu0 %v463
    %v526 = vpop.f32.mrb[0].mxu0
    %v527 = vadd.f32 %v451, %v526
    %v528 = vpop.f32.mrb[0].mxu0
    %v529 = vpop.f32.mrb[0].mxu0
    %v530 = vadd.f32 %v454, %v529
    %v531 = vpop.f32.mrb[0].mxu0
    %532 = vdwg.mxu0
    %v533 = vld [vmem:[%s1 + $0x30] sm:$0x7]
    %v538 = vrot.slane %v341, 1
    %v539 = vrot.slane %v342, 1
    %v540 = vsel %vm222, %v538, %v539
    %v541 = vrot.slane %v343, 1
    %v542 = vsel %vm222, %v539, %v541
    %v543 = vrot.slane %v344, 1
    %v544 = vsel %vm222, %v541, %v543
    %v546 = vsel %vm59, %v540, 0
    %v549 = vsel %vm59, %v542, 0
    %v552 = vsel %vm59, %v544, 0
    %v555 = vsel %vm59, %v543, 0
    %v558 = vsel %vm72, %v533, 0
    %560 = vmatprep.subr.bf16.mxu0 0
    %561 = vmatpush1.bf16.msra.mxu0 %v558
    %562 = vmatprep.subr.bf16.mxu0 0
    %563 = vmatpush1.bf16.msra.mxu0 0
    %564 = vmatprep.subr.bf16.mxu0 0
    %565 = vmatpush1.bf16.msra.mxu0 0
    %566 = vmatprep.subr.bf16.mxu0 0
    %567 = vmatpush1.bf16.msra.mxu0 0
    %568 = vmatprep.subr.bf16.mxu0 0
    %569 = vmatpush1.bf16.msra.mxu0 0
    %570 = vmatprep.subr.bf16.mxu0 0
    %571 = vmatpush1.bf16.msra.mxu0 0
    %572 = vmatprep.subr.bf16.mxu0 0
    %573 = vmatpush1.bf16.msra.mxu0 0
    %574 = vmatprep.subr.bf16.mxu0 0
    %575 = vmatpush1.bf16.msra.mxu0 0
    %576 = vmatprep.subr.bf16.mxu0 0
    %577 = vmatpush1.bf16.msra.mxu0 0
    %578 = vmatprep.subr.bf16.mxu0 0
    %579 = vmatpush1.bf16.msra.mxu0 0
    %580 = vmatprep.subr.bf16.mxu0 0
    %581 = vmatpush1.bf16.msra.mxu0 0
    %582 = vmatprep.subr.bf16.mxu0 0
    %583 = vmatpush1.bf16.msra.mxu0 0
    %584 = vmatprep.subr.bf16.mxu0 0
    %585 = vmatpush1.bf16.msra.mxu0 0
    %586 = vmatprep.subr.bf16.mxu0 0
    %587 = vmatpush1.bf16.msra.mxu0 0
    %588 = vmatprep.subr.bf16.mxu0 0
    %589 = vmatpush1.bf16.msra.mxu0 0
    %590 = vmatprep.subr.bf16.mxu0 0
    %591 = vmatpush1.bf16.msra.mxu0 0
    %592 = vmatprep.mubr.bf16.mxu0 0
    %593 = vmatmul.mubr.bf16.gmra.mrb[0].mxu0 %v546
    %v594 = vpop.f32.mrb[0].mxu0
    %v595 = vadd.f32 0.0, %v594
    %v596 = vpop.f32.mrb[0].mxu0
    %v597 = vpop.f32.mrb[0].mxu0
    %v598 = vadd.f32 0.0, %v597
    %v599 = vpop.f32.mrb[0].mxu0
    %600 = vmatprep.mubr.bf16.mxu0 0
    %601 = vmatmul.mubr.bf16.gmra.mrb[0].mxu0 %v549
    %v602 = vpop.f32.mrb[0].mxu0
    %v603 = vadd.f32 0.0, %v602
    %v604 = vpop.f32.mrb[0].mxu0
    %v605 = vpop.f32.mrb[0].mxu0
    %v606 = vadd.f32 0.0, %v605
    %v607 = vpop.f32.mrb[0].mxu0
    %608 = vmatprep.mubr.bf16.mxu0 0
    %609 = vmatmul.mubr.bf16.gmra.mrb[0].mxu0 %v552
    %v610 = vpop.f32.mrb[0].mxu0
    %v611 = vadd.f32 0.0, %v610
    %v612 = vpop.f32.mrb[0].mxu0
    %v613 = vpop.f32.mrb[0].mxu0
    %v614 = vadd.f32 0.0, %v613
    %v615 = vpop.f32.mrb[0].mxu0
    %616 = vmatprep.mubr.bf16.mxu0 0
    %617 = vmatmul.mubr.bf16.gmra.mrb[0].mxu0 %v555
    %v618 = vpop.f32.mrb[0].mxu0
    %v619 = vadd.f32 0.0, %v618
    %v620 = vpop.f32.mrb[0].mxu0
    %v621 = vpop.f32.mrb[0].mxu0
    %v622 = vadd.f32 0.0, %v621
    %v623 = vpop.f32.mrb[0].mxu0
    %624 = vdwg.mxu0
    %v625 = vadd.f32 %v503, %v595
    %v626 = vadd.f32 %v506, %v598
    %v627 = vadd.f32 %v511, %v603
    %v628 = vadd.f32 %v514, %v606
    %v629 = vadd.f32 %v519, %v611
    %v630 = vadd.f32 %v522, %v614
    %v631 = vadd.f32 %v527, %v619
    %v632 = vadd.f32 %v530, %v622
    %v633 = vld [vmem:[%s1 + $0x38] sm:$0x1]
    %v634 = vunpack.c.l.bf16 %v633
    %v635 = vlaneseq
    %v636 = vshrl.u32 %v635, 7
    %v637 = vsub.s32 0, %v636
    %v638 = vrot.slane %v634, %v637
    %v639 = vadd.f32 %v625, %v638
    %v640 = vadd.f32 %v626, %v638
    %v641 = vadd.f32 %v627, %v638
    %v642 = vadd.f32 %v628, %v638
    %v643 = vadd.f32 %v629, %v638
    %v644 = vadd.f32 %v630, %v638
    %v645 = vadd.f32 %v631, %v638
    %v646 = vadd.f32 %v632, %v638
    %v647 = vmax.f32 %v639, 0.0
    %v648 = vmax.f32 %v640, 0.0
    %v649 = vmax.f32 %v641, 0.0
    %v650 = vmax.f32 %v642, 0.0
    %v651 = vmax.f32 %v643, 0.0
    %v652 = vmax.f32 %v644, 0.0
    %v653 = vmax.f32 %v645, 0.0
    %v654 = vmax.f32 %v646, 0.0
    %vm663 = vcmask 1046528
    %v664 = vrot.slane %v647, 1
    %v665 = vrot.slane %v648, 1
    %v666 = vsel %vm663, %v664, %v665
    %v667 = vrot.slane %v649, 1
    %v668 = vsel %vm663, %v665, %v667
    %v669 = vrot.slane %v650, 1
    %v670 = vsel %vm663, %v667, %v669
    %v671 = vrot.slane %v651, 1
    %v672 = vsel %vm663, %v669, %v671
    %v673 = vrot.slane %v652, 1
    %v674 = vsel %vm663, %v671, %v673
    %v675 = vrot.slane %v653, 1
    %v676 = vsel %vm663, %v673, %v675
    %v677 = vrot.slane %v654, 1
    %v678 = vsel %vm663, %v675, %v677
    %v687 = vmax.f32 %v647, %v666
    %v688 = vmax.f32 %v648, %v668
    %v689 = vmax.f32 %v649, %v670
    %v690 = vmax.f32 %v650, %v672
    %v691 = vmax.f32 %v651, %v674
    %v692 = vmax.f32 %v652, %v676
    %v693 = vmax.f32 %v653, %v678
    %v694 = vmax.f32 %v654, %v677
    %v695 = vld [vmem:[%s1 + $0x40] sm:$0x7]
    %v696 = vpack.c.bf16 %v688, %v687
    %v697 = vpack.c.bf16 %v690, %v689
    %v698 = vpack.c.bf16 %v692, %v691
    %v699 = vpack.c.bf16 %v693, %v693
    %v700 = vld [vmem:[%s1 + $0x48] sm:$0x7]
    %v701 = vpack.c.bf16 %v694, %v693
    %v706 = vrot.slane %v696, 1
    %v707 = vrot.slane %v697, 1
    %v708 = vsel %vm222, %v706, %v707
    %v709 = vrot.slane %v698, 1
    %v710 = vsel %vm222, %v707, %v709
    %v711 = vrot.slane %v701, 1
    %v712 = vsel %vm222, %v709, %v711
    %v714 = vsel %vm59, %v708, 0
    %v717 = vsel %vm59, %v710, 0
    %v720 = vsel %vm59, %v712, 0
    %v723 = vsel %vm59, %v711, 0
    %v726 = vsel %vm72, %v700, 0
    %728 = vmatprep.subr.bf16.mxu0 0
    %729 = vmatpush1.bf16.msra.mxu0 %v726
    %730 = vmatprep.subr.bf16.mxu0 0
    %731 = vmatpush1.bf16.msra.mxu0 0
    %732 = vmatprep.subr.bf16.mxu0 0
    %733 = vmatpush1.bf16.msra.mxu0 0
    %734 = vmatprep.subr.bf16.mxu0 0
    %735 = vmatpush1.bf16.msra.mxu0 0
    %736 = vmatprep.subr.bf16.mxu0 0
    %737 = vmatpush1.bf16.msra.mxu0 0
    %738 = vmatprep.subr.bf16.mxu0 0
    %739 = vmatpush1.bf16.msra.mxu0 0
    %740 = vmatprep.subr.bf16.mxu0 0
    %741 = vmatpush1.bf16.msra.mxu0 0
    %742 = vmatprep.subr.bf16.mxu0 0
    %743 = vmatpush1.bf16.msra.mxu0 0
    %744 = vmatprep.subr.bf16.mxu0 0
    %745 = vmatpush1.bf16.msra.mxu0 0
    %746 = vmatprep.subr.bf16.mxu0 0
    %747 = vmatpush1.bf16.msra.mxu0 0
    %748 = vmatprep.subr.bf16.mxu0 0
    %749 = vmatpush1.bf16.msra.mxu0 0
    %750 = vmatprep.subr.bf16.mxu0 0
    %751 = vmatpush1.bf16.msra.mxu0 0
    %752 = vmatprep.subr.bf16.mxu0 0
    %753 = vmatpush1.bf16.msra.mxu0 0
    %754 = vmatprep.subr.bf16.mxu0 0
    %755 = vmatpush1.bf16.msra.mxu0 0
    %756 = vmatprep.subr.bf16.mxu0 0
    %757 = vmatpush1.bf16.msra.mxu0 0
    %758 = vmatprep.subr.bf16.mxu0 0
    %759 = vmatpush1.bf16.msra.mxu0 0
    %760 = vmatprep.mubr.bf16.mxu0 0
    %761 = vmatmul.mubr.bf16.gmra.mrb[0].mxu0 %v714
    %v762 = vpop.f32.mrb[0].mxu0
    %v763 = vadd.f32 0.0, %v762
    %v764 = vpop.f32.mrb[0].mxu0
    %v765 = vpop.f32.mrb[0].mxu0
    %v766 = vadd.f32 0.0, %v765
    %v767 = vpop.f32.mrb[0].mxu0
    %768 = vmatprep.mubr.bf16.mxu0 0
    %769 = vmatmul.mubr.bf16.gmra.mrb[0].mxu0 %v717
    %v770 = vpop.f32.mrb[0].mxu0
    %v771 = vadd.f32 0.0, %v770
    %v772 = vpop.f32.mrb[0].mxu0
    %v773 = vpop.f32.mrb[0].mxu0
    %v774 = vadd.f32 0.0, %v773
    %v775 = vpop.f32.mrb[0].mxu0
    %776 = vmatprep.mubr.bf16.mxu0 0
    %777 = vmatmul.mubr.bf16.gmra.mrb[0].mxu0 %v720
    %v778 = vpop.f32.mrb[0].mxu0
    %v779 = vadd.f32 0.0, %v778
    %v780 = vpop.f32.mrb[0].mxu0
    %v781 = vpop.f32.mrb[0].mxu0
    %v782 = vadd.f32 0.0, %v781
    %v783 = vpop.f32.mrb[0].mxu0
    %784 = vmatprep.mubr.bf16.mxu0 0
    %785 = vmatmul.mubr.bf16.gmra.mrb[0].mxu0 %v723
    %v786 = vpop.f32.mrb[0].mxu0
    %v787 = vadd.f32 0.0, %v786
    %v788 = vpop.f32.mrb[0].mxu0
    %v789 = vpop.f32.mrb[0].mxu0
    %v790 = vpop.f32.mrb[0].mxu0
    %791 = vdwg.mxu0
    %v793 = vsel %vm59, %v696, 0
    %v796 = vsel %vm59, %v697, 0
    %v799 = vsel %vm59, %v698, 0
    %v802 = vsel %vm59, %v699, 0
    %v805 = vsel %vm72, %v695, 0
    %807 = vmatprep.subr.bf16.mxu0 0
    %808 = vmatpush1.bf16.msra.mxu0 %v805
    %809 = vmatprep.subr.bf16.mxu0 0
    %810 = vmatpush1.bf16.msra.mxu0 0
    %811 = vmatprep.subr.bf16.mxu0 0
    %812 = vmatpush1.bf16.msra.mxu0 0
    %813 = vmatprep.subr.bf16.mxu0 0
    %814 = vmatpush1.bf16.msra.mxu0 0
    %815 = vmatprep.subr.bf16.mxu0 0
    %816 = vmatpush1.bf16.msra.mxu0 0
    %817 = vmatprep.subr.bf16.mxu0 0
    %818 = vmatpush1.bf16.msra.mxu0 0
    %819 = vmatprep.subr.bf16.mxu0 0
    %820 = vmatpush1.bf16.msra.mxu0 0
    %821 = vmatprep.subr.bf16.mxu0 0
    %822 = vmatpush1.bf16.msra.mxu0 0
    %823 = vmatprep.subr.bf16.mxu0 0
    %824 = vmatpush1.bf16.msra.mxu0 0
    %825 = vmatprep.subr.bf16.mxu0 0
    %826 = vmatpush1.bf16.msra.mxu0 0
    %827 = vmatprep.subr.bf16.mxu0 0
    %828 = vmatpush1.bf16.msra.mxu0 0
    %829 = vmatprep.subr.bf16.mxu0 0
    %830 = vmatpush1.bf16.msra.mxu0 0
    %831 = vmatprep.subr.bf16.mxu0 0
    %832 = vmatpush1.bf16.msra.mxu0 0
    %833 = vmatprep.subr.bf16.mxu0 0
    %834 = vmatpush1.bf16.msra.mxu0 0
    %835 = vmatprep.subr.bf16.mxu0 0
    %836 = vmatpush1.bf16.msra.mxu0 0
    %837 = vmatprep.subr.bf16.mxu0 0
    %838 = vmatpush1.bf16.msra.mxu0 0
    %839 = vmatprep.mubr.bf16.mxu0 0
    %840 = vmatmul.mubr.bf16.gmra.mrb[0].mxu0 %v793
    %v841 = vpop.f32.mrb[0].mxu0
    %v842 = vadd.f32 %v763, %v841
    %v843 = vpop.f32.mrb[0].mxu0
    %v844 = vpop.f32.mrb[0].mxu0
    %v845 = vadd.f32 %v766, %v844
    %v846 = vpop.f32.mrb[0].mxu0
    %847 = vmatprep.mubr.bf16.mxu0 0
    %848 = vmatmul.mubr.bf16.gmra.mrb[0].mxu0 %v796
    %v849 = vpop.f32.mrb[0].mxu0
    %v850 = vadd.f32 %v771, %v849
    %v851 = vpop.f32.mrb[0].mxu0
    %v852 = vpop.f32.mrb[0].mxu0
    %v853 = vadd.f32 %v774, %v852
    %v854 = vpop.f32.mrb[0].mxu0
    %855 = vmatprep.mubr.bf16.mxu0 0
    %856 = vmatmul.mubr.bf16.gmra.mrb[0].mxu0 %v799
    %v857 = vpop.f32.mrb[0].mxu0
    %v858 = vadd.f32 %v779, %v857
    %v859 = vpop.f32.mrb[0].mxu0
    %v860 = vpop.f32.mrb[0].mxu0
    %v861 = vadd.f32 %v782, %v860
    %v862 = vpop.f32.mrb[0].mxu0
    %863 = vmatprep.mubr.bf16.mxu0 0
    %864 = vmatmul.mubr.bf16.gmra.mrb[0].mxu0 %v802
    %v865 = vpop.f32.mrb[0].mxu0
    %v866 = vadd.f32 %v787, %v865
    %v867 = vpop.f32.mrb[0].mxu0
    %v868 = vpop.f32.mrb[0].mxu0
    %v869 = vpop.f32.mrb[0].mxu0
    %870 = vdwg.mxu0
    %v871 = vld [vmem:[%s1 + $0x50] sm:$0x7]
    %vm872 = vcmask 1045504
    %v873 = vrot.slane %v696, 2
    %v874 = vrot.slane %v697, 2
    %v875 = vsel %vm872, %v873, %v874
    %v876 = vrot.slane %v698, 2
    %v877 = vsel %vm872, %v874, %v876
    %v878 = vrot.slane %v701, 2
    %v879 = vsel %vm872, %v876, %v878
    %v881 = vsel %vm59, %v875, 0
    %v884 = vsel %vm59, %v877, 0
    %v887 = vsel %vm59, %v879, 0
    %v890 = vsel %vm59, %v878, 0
    %v893 = vsel %vm72, %v871, 0
    %895 = vmatprep.subr.bf16.mxu0 0
    %896 = vmatpush1.bf16.msra.mxu0 %v893
    %897 = vmatprep.subr.bf16.mxu0 0
    %898 = vmatpush1.bf16.msra.mxu0 0
    %899 = vmatprep.subr.bf16.mxu0 0
    %900 = vmatpush1.bf16.msra.mxu0 0
    %901 = vmatprep.subr.bf16.mxu0 0
    %902 = vmatpush1.bf16.msra.mxu0 0
    %903 = vmatprep.subr.bf16.mxu0 0
    %904 = vmatpush1.bf16.msra.mxu0 0
    %905 = vmatprep.subr.bf16.mxu0 0
    %906 = vmatpush1.bf16.msra.mxu0 0
    %907 = vmatprep.subr.bf16.mxu0 0
    %908 = vmatpush1.bf16.msra.mxu0 0
    %909 = vmatprep.subr.bf16.mxu0 0
    %910 = vmatpush1.bf16.msra.mxu0 0
    %911 = vmatprep.subr.bf16.mxu0 0
    %912 = vmatpush1.bf16.msra.mxu0 0
    %913 = vmatprep.subr.bf16.mxu0 0
    %914 = vmatpush1.bf16.msra.mxu0 0
    %915 = vmatprep.subr.bf16.mxu0 0
    %916 = vmatpush1.bf16.msra.mxu0 0
    %917 = vmatprep.subr.bf16.mxu0 0
    %918 = vmatpush1.bf16.msra.mxu0 0
    %919 = vmatprep.subr.bf16.mxu0 0
    %920 = vmatpush1.bf16.msra.mxu0 0
    %921 = vmatprep.subr.bf16.mxu0 0
    %922 = vmatpush1.bf16.msra.mxu0 0
    %923 = vmatprep.subr.bf16.mxu0 0
    %924 = vmatpush1.bf16.msra.mxu0 0
    %925 = vmatprep.subr.bf16.mxu0 0
    %926 = vmatpush1.bf16.msra.mxu0 0
    %927 = vmatprep.mubr.bf16.mxu0 0
    %928 = vmatmul.mubr.bf16.gmra.mrb[0].mxu0 %v881
    %v929 = vpop.f32.mrb[0].mxu0
    %v930 = vadd.f32 0.0, %v929
    %v931 = vpop.f32.mrb[0].mxu0
    %v932 = vpop.f32.mrb[0].mxu0
    %v933 = vadd.f32 0.0, %v932
    %v934 = vpop.f32.mrb[0].mxu0
    %935 = vmatprep.mubr.bf16.mxu0 0
    %936 = vmatmul.mubr.bf16.gmra.mrb[0].mxu0 %v884
    %v937 = vpop.f32.mrb[0].mxu0
    %v938 = vadd.f32 0.0, %v937
    %v939 = vpop.f32.mrb[0].mxu0
    %v940 = vpop.f32.mrb[0].mxu0
    %v941 = vadd.f32 0.0, %v940
    %v942 = vpop.f32.mrb[0].mxu0
    %943 = vmatprep.mubr.bf16.mxu0 0
    %944 = vmatmul.mubr.bf16.gmra.mrb[0].mxu0 %v887
    %v945 = vpop.f32.mrb[0].mxu0
    %v946 = vadd.f32 0.0, %v945
    %v947 = vpop.f32.mrb[0].mxu0
    %v948 = vpop.f32.mrb[0].mxu0
    %v949 = vadd.f32 0.0, %v948
    %v950 = vpop.f32.mrb[0].mxu0
    %951 = vmatprep.mubr.bf16.mxu0 0
    %952 = vmatmul.mubr.bf16.gmra.mrb[0].mxu0 %v890
    %v953 = vpop.f32.mrb[0].mxu0
    %v954 = vadd.f32 0.0, %v953
    %v955 = vpop.f32.mrb[0].mxu0
    %v956 = vpop.f32.mrb[0].mxu0
    %v957 = vpop.f32.mrb[0].mxu0
    %958 = vdwg.mxu0
    %v959 = vadd.f32 %v842, %v930
    %v960 = vadd.f32 %v845, %v933
    %v961 = vadd.f32 %v850, %v938
    %v962 = vadd.f32 %v853, %v941
    %v963 = vadd.f32 %v858, %v946
    %v964 = vadd.f32 %v861, %v949
    %v965 = vadd.f32 %v866, %v954
    %v966 = vld [vmem:[%s1 + $0x58] sm:$0x1]
    %v967 = vunpack.c.l.bf16 %v966
    %v968 = vlaneseq
    %v969 = vshrl.u32 %v968, 7
    %v970 = vsub.s32 0, %v969
    %v971 = vrot.slane %v967, %v970
    %v972 = vadd.f32 %v959, %v971
    %v973 = vadd.f32 %v960, %v971
    %v974 = vadd.f32 %v961, %v971
    %v975 = vadd.f32 %v962, %v971
    %v976 = vadd.f32 %v963, %v971
    %v977 = vadd.f32 %v964, %v971
    %v978 = vadd.f32 %v965, %v971
    %v979 = vmax.f32 %v972, 0.0
    %v980 = vmax.f32 %v973, 0.0
    %v981 = vmax.f32 %v974, 0.0
    %v982 = vmax.f32 %v975, 0.0
    %v983 = vmax.f32 %v976, 0.0
    %v984 = vmax.f32 %v977, 0.0
    %v985 = vmax.f32 %v978, 0.0
    %v986 = vld [vmem:[%s1 + $0x60] sm:$0xf]
    %v987 = vld [vmem:[%s1 + $0x64] sm:$0x3]
    %v988 = vpack.c.bf16 %v980, %v979
    %v989 = vpack.c.bf16 %v982, %v981
    %v990 = vpack.c.bf16 %v984, %v983
    %v991 = vpack.c.bf16 %v985, %v985
    %v992 = vld [vmem:[%s1 + $0x68] sm:$0xf]
    %v993 = vld [vmem:[%s1 + $0x6c] sm:$0x3]
    %v998 = vrot.slane %v988, 1
    %v999 = vrot.slane %v989, 1
    %v1000 = vsel %vm222, %v998, %v999
    %v1001 = vrot.slane %v990, 1
    %v1002 = vsel %vm222, %v999, %v1001
    %v1003 = vrot.slane %v991, 1
    %v1004 = vsel %vm222, %v1001, %v1003
    %v1007 = vunpack.c.l.b16 %v992
    %v1008 = vunpack.c.l.b16 %v993
    %v1009 = vpack.c.b16 %v1008, %v1007
    %vm1010 = vcmask 97280
    %v1012 = vsel %vm1010, %v1000, 0
    %v1015 = vsel %vm1010, %v1002, 0
    %v1018 = vsel %vm1010, %v1004, 0
    %v1021 = vsel %vm1010, %v1003, 0
    %vm1023 = vcmask 1045504
    %v1025 = vsel %vm1023, %v1009, 0
    %1027 = vmatprep.subr.bf16.mxu0 0
    %1028 = vmatpush1.bf16.msra.mxu0 %v1025
    %1029 = vmatprep.subr.bf16.mxu0 0
    %1030 = vmatpush1.bf16.msra.mxu0 0
    %1031 = vmatprep.subr.bf16.mxu0 0
    %1032 = vmatpush1.bf16.msra.mxu0 0
    %1033 = vmatprep.subr.bf16.mxu0 0
    %1034 = vmatpush1.bf16.msra.mxu0 0
    %1035 = vmatprep.subr.bf16.mxu0 0
    %1036 = vmatpush1.bf16.msra.mxu0 0
    %1037 = vmatprep.subr.bf16.mxu0 0
    %1038 = vmatpush1.bf16.msra.mxu0 0
    %1039 = vmatprep.subr.bf16.mxu0 0
    %1040 = vmatpush1.bf16.msra.mxu0 0
    %1041 = vmatprep.subr.bf16.mxu0 0
    %1042 = vmatpush1.bf16.msra.mxu0 0
    %1043 = vmatprep.subr.bf16.mxu0 0
    %1044 = vmatpush1.bf16.msra.mxu0 0
    %1045 = vmatprep.subr.bf16.mxu0 0
    %1046 = vmatpush1.bf16.msra.mxu0 0
    %1047 = vmatprep.subr.bf16.mxu0 0
    %1048 = vmatpush1.bf16.msra.mxu0 0
    %1049 = vmatprep.subr.bf16.mxu0 0
    %1050 = vmatpush1.bf16.msra.mxu0 0
    %1051 = vmatprep.subr.bf16.mxu0 0
    %1052 = vmatpush1.bf16.msra.mxu0 0
    %1053 = vmatprep.subr.bf16.mxu0 0
    %1054 = vmatpush1.bf16.msra.mxu0 0
    %1055 = vmatprep.subr.bf16.mxu0 0
    %1056 = vmatpush1.bf16.msra.mxu0 0
    %1057 = vmatprep.subr.bf16.mxu0 0
    %1058 = vmatpush1.bf16.msra.mxu0 0
    %1059 = vmatprep.mubr.bf16.mxu0 0
    %1060 = vmatmul.mubr.bf16.gmra.mrb[0].mxu0 %v1012
    %v1061 = vpop.f32.mrb[0].mxu0
    %v1062 = vadd.f32 0.0, %v1061
    %v1063 = vpop.f32.mrb[0].mxu0
    %v1064 = vpop.f32.mrb[0].mxu0
    %v1065 = vadd.f32 0.0, %v1064
    %v1066 = vpop.f32.mrb[0].mxu0
    %1067 = vmatprep.mubr.bf16.mxu0 0
    %1068 = vmatmul.mubr.bf16.gmra.mrb[0].mxu0 %v1015
    %v1069 = vpop.f32.mrb[0].mxu0
    %v1070 = vadd.f32 0.0, %v1069
    %v1071 = vpop.f32.mrb[0].mxu0
    %v1072 = vpop.f32.mrb[0].mxu0
    %v1073 = vadd.f32 0.0, %v1072
    %v1074 = vpop.f32.mrb[0].mxu0
    %1075 = vmatprep.mubr.bf16.mxu0 0
    %1076 = vmatmul.mubr.bf16.gmra.mrb[0].mxu0 %v1018
    %v1077 = vpop.f32.mrb[0].mxu0
    %v1078 = vadd.f32 0.0, %v1077
    %v1079 = vpop.f32.mrb[0].mxu0
    %v1080 = vpop.f32.mrb[0].mxu0
    %v1081 = vadd.f32 0.0, %v1080
    %v1082 = vpop.f32.mrb[0].mxu0
    %1083 = vmatprep.mubr.bf16.mxu0 0
    %1084 = vmatmul.mubr.bf16.gmra.mrb[0].mxu0 %v1021
    %v1085 = vpop.f32.mrb[0].mxu0
    %v1086 = vadd.f32 0.0, %v1085
    %v1087 = vpop.f32.mrb[0].mxu0
    %v1088 = vpop.f32.mrb[0].mxu0
    %v1089 = vpop.f32.mrb[0].mxu0
    %1090 = vdwg.mxu0
    %v1093 = vunpack.c.l.b16 %v986
    %v1094 = vunpack.c.l.b16 %v987
    %v1095 = vpack.c.b16 %v1094, %v1093
    %v1097 = vsel %vm1010, %v988, 0
    %v1100 = vsel %vm1010, %v989, 0
    %v1103 = vsel %vm1010, %v990, 0
    %v1106 = vsel %vm1010, %v991, 0
    %v1109 = vsel %vm1023, %v1095, 0
    %1111 = vmatprep.subr.bf16.mxu0 0
    %1112 = vmatpush1.bf16.msra.mxu0 %v1109
    %1113 = vmatprep.subr.bf16.mxu0 0
    %1114 = vmatpush1.bf16.msra.mxu0 0
    %1115 = vmatprep.subr.bf16.mxu0 0
    %1116 = vmatpush1.bf16.msra.mxu0 0
    %1117 = vmatprep.subr.bf16.mxu0 0
    %1118 = vmatpush1.bf16.msra.mxu0 0
    %1119 = vmatprep.subr.bf16.mxu0 0
    %1120 = vmatpush1.bf16.msra.mxu0 0
    %1121 = vmatprep.subr.bf16.mxu0 0
    %1122 = vmatpush1.bf16.msra.mxu0 0
    %1123 = vmatprep.subr.bf16.mxu0 0
    %1124 = vmatpush1.bf16.msra.mxu0 0
    %1125 = vmatprep.subr.bf16.mxu0 0
    %1126 = vmatpush1.bf16.msra.mxu0 0
    %1127 = vmatprep.subr.bf16.mxu0 0
    %1128 = vmatpush1.bf16.msra.mxu0 0
    %1129 = vmatprep.subr.bf16.mxu0 0
    %1130 = vmatpush1.bf16.msra.mxu0 0
    %1131 = vmatprep.subr.bf16.mxu0 0
    %1132 = vmatpush1.bf16.msra.mxu0 0
    %1133 = vmatprep.subr.bf16.mxu0 0
    %1134 = vmatpush1.bf16.msra.mxu0 0
    %1135 = vmatprep.subr.bf16.mxu0 0
    %1136 = vmatpush1.bf16.msra.mxu0 0
    %1137 = vmatprep.subr.bf16.mxu0 0
    %1138 = vmatpush1.bf16.msra.mxu0 0
    %1139 = vmatprep.subr.bf16.mxu0 0
    %1140 = vmatpush1.bf16.msra.mxu0 0
    %1141 = vmatprep.subr.bf16.mxu0 0
    %1142 = vmatpush1.bf16.msra.mxu0 0
    %1143 = vmatprep.mubr.bf16.mxu0 0
    %1144 = vmatmul.mubr.bf16.gmra.mrb[0].mxu0 %v1097
    %v1145 = vpop.f32.mrb[0].mxu0
    %v1146 = vadd.f32 %v1062, %v1145
    %v1147 = vpop.f32.mrb[0].mxu0
    %v1148 = vpop.f32.mrb[0].mxu0
    %v1149 = vadd.f32 %v1065, %v1148
    %v1150 = vpop.f32.mrb[0].mxu0
    %1151 = vmatprep.mubr.bf16.mxu0 0
    %1152 = vmatmul.mubr.bf16.gmra.mrb[0].mxu0 %v1100
    %v1153 = vpop.f32.mrb[0].mxu0
    %v1154 = vadd.f32 %v1070, %v1153
    %v1155 = vpop.f32.mrb[0].mxu0
    %v1156 = vpop.f32.mrb[0].mxu0
    %v1157 = vadd.f32 %v1073, %v1156
    %v1158 = vpop.f32.mrb[0].mxu0
    %1159 = vmatprep.mubr.bf16.mxu0 0
    %1160 = vmatmul.mubr.bf16.gmra.mrb[0].mxu0 %v1103
    %v1161 = vpop.f32.mrb[0].mxu0
    %v1162 = vadd.f32 %v1078, %v1161
    %v1163 = vpop.f32.mrb[0].mxu0
    %v1164 = vpop.f32.mrb[0].mxu0
    %v1165 = vadd.f32 %v1081, %v1164
    %v1166 = vpop.f32.mrb[0].mxu0
    %1167 = vmatprep.mubr.bf16.mxu0 0
    %1168 = vmatmul.mubr.bf16.gmra.mrb[0].mxu0 %v1106
    %v1169 = vpop.f32.mrb[0].mxu0
    %v1170 = vadd.f32 %v1086, %v1169
    %v1171 = vpop.f32.mrb[0].mxu0
    %v1172 = vpop.f32.mrb[0].mxu0
    %v1173 = vpop.f32.mrb[0].mxu0
    %1174 = vdwg.mxu0
    %v1175 = vld [vmem:[%s1 + $0x70] sm:$0xf]
    %v1176 = vld [vmem:[%s1 + $0x74] sm:$0x3]
    %v1177 = vrot.slane %v988, 2
    %v1178 = vrot.slane %v989, 2
    %v1179 = vsel %vm872, %v1177, %v1178
    %v1180 = vrot.slane %v990, 2
    %v1181 = vsel %vm872, %v1178, %v1180
    %v1182 = vrot.slane %v991, 2
    %v1183 = vsel %vm872, %v1180, %v1182
    %v1186 = vunpack.c.l.b16 %v1175
    %v1187 = vunpack.c.l.b16 %v1176
    %v1188 = vpack.c.b16 %v1187, %v1186
    %v1190 = vsel %vm1010, %v1179, 0
    %v1193 = vsel %vm1010, %v1181, 0
    %v1196 = vsel %vm1010, %v1183, 0
    %v1199 = vsel %vm1010, %v1182, 0
    %v1202 = vsel %vm1023, %v1188, 0
    %1204 = vmatprep.subr.bf16.mxu0 0
    %1205 = vmatpush1.bf16.msra.mxu0 %v1202
    %1206 = vmatprep.subr.bf16.mxu0 0
    %1207 = vmatpush1.bf16.msra.mxu0 0
    %1208 = vmatprep.subr.bf16.mxu0 0
    %1209 = vmatpush1.bf16.msra.mxu0 0
    %1210 = vmatprep.subr.bf16.mxu0 0
    %1211 = vmatpush1.bf16.msra.mxu0 0
    %1212 = vmatprep.subr.bf16.mxu0 0
    %1213 = vmatpush1.bf16.msra.mxu0 0
    %1214 = vmatprep.subr.bf16.mxu0 0
    %1215 = vmatpush1.bf16.msra.mxu0 0
    %1216 = vmatprep.subr.bf16.mxu0 0
    %1217 = vmatpush1.bf16.msra.mxu0 0
    %1218 = vmatprep.subr.bf16.mxu0 0
    %1219 = vmatpush1.bf16.msra.mxu0 0
    %1220 = vmatprep.subr.bf16.mxu0 0
    %1221 = vmatpush1.bf16.msra.mxu0 0
    %1222 = vmatprep.subr.bf16.mxu0 0
    %1223 = vmatpush1.bf16.msra.mxu0 0
    %1224 = vmatprep.subr.bf16.mxu0 0
    %1225 = vmatpush1.bf16.msra.mxu0 0
    %1226 = vmatprep.subr.bf16.mxu0 0
    %1227 = vmatpush1.bf16.msra.mxu0 0
    %1228 = vmatprep.subr.bf16.mxu0 0
    %1229 = vmatpush1.bf16.msra.mxu0 0
    %1230 = vmatprep.subr.bf16.mxu0 0
    %1231 = vmatpush1.bf16.msra.mxu0 0
    %1232 = vmatprep.subr.bf16.mxu0 0
    %1233 = vmatpush1.bf16.msra.mxu0 0
    %1234 = vmatprep.subr.bf16.mxu0 0
    %1235 = vmatpush1.bf16.msra.mxu0 0
    %1236 = vmatprep.mubr.bf16.mxu0 0
    %1237 = vmatmul.mubr.bf16.gmra.mrb[0].mxu0 %v1190
    %v1238 = vpop.f32.mrb[0].mxu0
    %v1239 = vadd.f32 0.0, %v1238
    %v1240 = vpop.f32.mrb[0].mxu0
    %v1241 = vpop.f32.mrb[0].mxu0
    %v1242 = vadd.f32 0.0, %v1241
    %v1243 = vpop.f32.mrb[0].mxu0
    %1244 = vmatprep.mubr.bf16.mxu0 0
    %1245 = vmatmul.mubr.bf16.gmra.mrb[0].mxu0 %v1193
    %v1246 = vpop.f32.mrb[0].mxu0
    %v1247 = vadd.f32 0.0, %v1246
    %v1248 = vpop.f32.mrb[0].mxu0
    %v1249 = vpop.f32.mrb[0].mxu0
    %v1250 = vadd.f32 0.0, %v1249
    %v1251 = vpop.f32.mrb[0].mxu0
    %1252 = vmatprep.mubr.bf16.mxu0 0
    %1253 = vmatmul.mubr.bf16.gmra.mrb[0].mxu0 %v1196
    %v1254 = vpop.f32.mrb[0].mxu0
    %v1255 = vadd.f32 0.0, %v1254
    %v1256 = vpop.f32.mrb[0].mxu0
    %v1257 = vpop.f32.mrb[0].mxu0
    %v1258 = vadd.f32 0.0, %v1257
    %v1259 = vpop.f32.mrb[0].mxu0
    %1260 = vmatprep.mubr.bf16.mxu0 0
    %1261 = vmatmul.mubr.bf16.gmra.mrb[0].mxu0 %v1199
    %v1262 = vpop.f32.mrb[0].mxu0
    %v1263 = vadd.f32 0.0, %v1262
    %v1264 = vpop.f32.mrb[0].mxu0
    %v1265 = vpop.f32.mrb[0].mxu0
    %v1266 = vpop.f32.mrb[0].mxu0
    %1267 = vdwg.mxu0
    %v1268 = vadd.f32 %v1146, %v1239
    %v1269 = vadd.f32 %v1149, %v1242
    %v1270 = vadd.f32 %v1154, %v1247
    %v1271 = vadd.f32 %v1157, %v1250
    %v1272 = vadd.f32 %v1162, %v1255
    %v1273 = vadd.f32 %v1165, %v1258
    %v1274 = vadd.f32 %v1170, %v1263
    %v1275 = vld [vmem:[%s1 + $0x78] sm:$0x1]
    %v1276 = vunpack.c.l.bf16 %v1275
    %v1277 = vlaneseq
    %v1278 = vshrl.u32 %v1277, 7
    %v1279 = vsub.s32 0, %v1278
    %v1280 = vrot.slane %v1276, %v1279
    %v1281 = vadd.f32 %v1268, %v1280
    %v1282 = vadd.f32 %v1269, %v1280
    %v1283 = vadd.f32 %v1270, %v1280
    %v1284 = vadd.f32 %v1271, %v1280
    %v1285 = vadd.f32 %v1272, %v1280
    %v1286 = vadd.f32 %v1273, %v1280
    %v1287 = vadd.f32 %v1274, %v1280
    %v1288 = vmax.f32 %v1281, 0.0
    %v1289 = vmax.f32 %v1282, 0.0
    %v1290 = vmax.f32 %v1283, 0.0
    %v1291 = vmax.f32 %v1284, 0.0
    %v1292 = vmax.f32 %v1285, 0.0
    %v1293 = vmax.f32 %v1286, 0.0
    %v1294 = vmax.f32 %v1287, 0.0
    %v1302 = vrot.slane %v1288, 2
    %v1303 = vrot.slane %v1289, 2
    %v1304 = vsel %vm1023, %v1302, %v1303
    %v1305 = vrot.slane %v1290, 2
    %v1306 = vsel %vm1023, %v1303, %v1305
    %v1307 = vrot.slane %v1291, 2
    %v1308 = vsel %vm1023, %v1305, %v1307
    %v1309 = vrot.slane %v1292, 2
    %v1310 = vsel %vm1023, %v1307, %v1309
    %v1311 = vrot.slane %v1293, 2
    %v1312 = vsel %vm1023, %v1309, %v1311
    %v1313 = vrot.slane %v1294, 2
    %v1314 = vsel %vm1023, %v1311, %v1313
    %v1322 = vmax.f32 %v1288, %v1304
    %v1323 = vmax.f32 %v1289, %v1306
    %v1324 = vmax.f32 %v1290, %v1308
    %v1325 = vmax.f32 %v1291, %v1310
    %v1326 = vmax.f32 %v1292, %v1312
    %v1327 = vmax.f32 %v1293, %v1314
    %v1328 = vmax.f32 %v1294, %v1313
    %v1329 = vld [vmem:[%s1 + $0x80] sm:$0xf]
    %v1330 = vld [vmem:[%s1 + $0x84] sm:$0x3]
    %v1331 = vpack.c.bf16 %v1323, %v1322
    %v1332 = vpack.c.bf16 %v1325, %v1324
    %v1333 = vpack.c.bf16 %v1326, %v1326
    %v1334 = vld [vmem:[%s1 + $0x88] sm:$0xf]
    %v1335 = vld [vmem:[%s1 + $0x8c] sm:$0x3]
    %v1339 = vrot.slane %v1331, 2
    %v1340 = vrot.slane %v1332, 2
    %v1341 = vsel %vm872, %v1339, %v1340
    %v1342 = vrot.slane %v1333, 2
    %v1343 = vsel %vm872, %v1340, %v1342
    %v1346 = vunpack.c.l.b16 %v1334
    %v1347 = vunpack.c.l.b16 %v1335
    %v1348 = vpack.c.b16 %v1347, %v1346
    %v1350 = vsel %vm1010, %v1341, 0
    %v1353 = vsel %vm1010, %v1343, 0
    %v1356 = vsel %vm1010, %v1342, 0
    %v1359 = vsel %vm1023, %v1348, 0
    %1361 = vmatprep.subr.bf16.mxu0 0
    %1362 = vmatpush1.bf16.msra.mxu0 %v1359
    %1363 = vmatprep.subr.bf16.mxu0 0
    %1364 = vmatpush1.bf16.msra.mxu0 0
    %1365 = vmatprep.subr.bf16.mxu0 0
    %1366 = vmatpush1.bf16.msra.mxu0 0
    %1367 = vmatprep.subr.bf16.mxu0 0
    %1368 = vmatpush1.bf16.msra.mxu0 0
    %1369 = vmatprep.subr.bf16.mxu0 0
    %1370 = vmatpush1.bf16.msra.mxu0 0
    %1371 = vmatprep.subr.bf16.mxu0 0
    %1372 = vmatpush1.bf16.msra.mxu0 0
    %1373 = vmatprep.subr.bf16.mxu0 0
    %1374 = vmatpush1.bf16.msra.mxu0 0
    %1375 = vmatprep.subr.bf16.mxu0 0
    %1376 = vmatpush1.bf16.msra.mxu0 0
    %1377 = vmatprep.subr.bf16.mxu0 0
    %1378 = vmatpush1.bf16.msra.mxu0 0
    %1379 = vmatprep.subr.bf16.mxu0 0
    %1380 = vmatpush1.bf16.msra.mxu0 0
    %1381 = vmatprep.subr.bf16.mxu0 0
    %1382 = vmatpush1.bf16.msra.mxu0 0
    %1383 = vmatprep.subr.bf16.mxu0 0
    %1384 = vmatpush1.bf16.msra.mxu0 0
    %1385 = vmatprep.subr.bf16.mxu0 0
    %1386 = vmatpush1.bf16.msra.mxu0 0
    %1387 = vmatprep.subr.bf16.mxu0 0
    %1388 = vmatpush1.bf16.msra.mxu0 0
    %1389 = vmatprep.subr.bf16.mxu0 0
    %1390 = vmatpush1.bf16.msra.mxu0 0
    %1391 = vmatprep.subr.bf16.mxu0 0
    %1392 = vmatpush1.bf16.msra.mxu0 0
    %1393 = vmatprep.mubr.bf16.mxu0 0
    %1394 = vmatmul.mubr.bf16.gmra.mrb[0].mxu0 %v1350
    %v1395 = vpop.f32.mrb[0].mxu0
    %v1396 = vadd.f32 0.0, %v1395
    %v1397 = vpop.f32.mrb[0].mxu0
    %v1398 = vpop.f32.mrb[0].mxu0
    %v1399 = vpop.f32.mrb[0].mxu0
    %1400 = vmatprep.mubr.bf16.mxu0 0
    %1401 = vmatmul.mubr.bf16.gmra.mrb[0].mxu0 %v1353
    %v1402 = vpop.f32.mrb[0].mxu0
    %v1403 = vpop.f32.mrb[0].mxu0
    %v1404 = vpop.f32.mrb[0].mxu0
    %v1405 = vpop.f32.mrb[0].mxu0
    %1406 = vmatprep.mubr.bf16.mxu0 0
    %1407 = vmatmul.mubr.bf16.gmra.mrb[0].mxu0 %v1356
    %v1408 = vpop.f32.mrb[0].mxu0
    %v1409 = vadd.f32 0.0, %v1408
    %v1410 = vpop.f32.mrb[0].mxu0
    %v1411 = vpop.f32.mrb[0].mxu0
    %v1412 = vpop.f32.mrb[0].mxu0
    %1413 = vdwg.mxu0
    %v1416 = vunpack.c.l.b16 %v1329
    %v1417 = vunpack.c.l.b16 %v1330
    %v1418 = vpack.c.b16 %v1417, %v1416
    %v1420 = vsel %vm1010, %v1331, 0
    %v1423 = vsel %vm1010, %v1332, 0
    %v1426 = vsel %vm1010, %v1333, 0
    %v1429 = vsel %vm1023, %v1418, 0
    %1431 = vmatprep.subr.bf16.mxu0 0
    %1432 = vmatpush1.bf16.msra.mxu0 %v1429
    %1433 = vmatprep.subr.bf16.mxu0 0
    %1434 = vmatpush1.bf16.msra.mxu0 0
    %1435 = vmatprep.subr.bf16.mxu0 0
    %1436 = vmatpush1.bf16.msra.mxu0 0
    %1437 = vmatprep.subr.bf16.mxu0 0
    %1438 = vmatpush1.bf16.msra.mxu0 0
    %1439 = vmatprep.subr.bf16.mxu0 0
    %1440 = vmatpush1.bf16.msra.mxu0 0
    %1441 = vmatprep.subr.bf16.mxu0 0
    %1442 = vmatpush1.bf16.msra.mxu0 0
    %1443 = vmatprep.subr.bf16.mxu0 0
    %1444 = vmatpush1.bf16.msra.mxu0 0
    %1445 = vmatprep.subr.bf16.mxu0 0
    %1446 = vmatpush1.bf16.msra.mxu0 0
    %1447 = vmatprep.subr.bf16.mxu0 0
    %1448 = vmatpush1.bf16.msra.mxu0 0
    %1449 = vmatprep.subr.bf16.mxu0 0
    %1450 = vmatpush1.bf16.msra.mxu0 0
    %1451 = vmatprep.subr.bf16.mxu0 0
    %1452 = vmatpush1.bf16.msra.mxu0 0
    %1453 = vmatprep.subr.bf16.mxu0 0
    %1454 = vmatpush1.bf16.msra.mxu0 0
    %1455 = vmatprep.subr.bf16.mxu0 0
    %1456 = vmatpush1.bf16.msra.mxu0 0
    %1457 = vmatprep.subr.bf16.mxu0 0
    %1458 = vmatpush1.bf16.msra.mxu0 0
    %1459 = vmatprep.subr.bf16.mxu0 0
    %1460 = vmatpush1.bf16.msra.mxu0 0
    %1461 = vmatprep.subr.bf16.mxu0 0
    %1462 = vmatpush1.bf16.msra.mxu0 0
    %1463 = vmatprep.mubr.bf16.mxu0 0
    %1464 = vmatmul.mubr.bf16.gmra.mrb[0].mxu0 %v1420
    %v1465 = vpop.f32.mrb[0].mxu0
    %v1466 = vadd.f32 %v1396, %v1465
    %v1467 = vpop.f32.mrb[0].mxu0
    %v1468 = vpop.f32.mrb[0].mxu0
    %v1469 = vpop.f32.mrb[0].mxu0
    %1470 = vmatprep.mubr.bf16.mxu0 0
    %1471 = vmatmul.mubr.bf16.gmra.mrb[0].mxu0 %v1423
    %v1472 = vpop.f32.mrb[0].mxu0
    %v1473 = vpop.f32.mrb[0].mxu0
    %v1474 = vpop.f32.mrb[0].mxu0
    %v1475 = vpop.f32.mrb[0].mxu0
    %1476 = vmatprep.mubr.bf16.mxu0 0
    %1477 = vmatmul.mubr.bf16.gmra.mrb[0].mxu0 %v1426
    %v1478 = vpop.f32.mrb[0].mxu0
    %v1479 = vadd.f32 %v1409, %v1478
    %v1480 = vpop.f32.mrb[0].mxu0
    %v1481 = vpop.f32.mrb[0].mxu0
    %v1482 = vpop.f32.mrb[0].mxu0
    %1483 = vdwg.mxu0
    %v1484 = vld [vmem:[%s1 + $0x90] sm:$0xf]
    %v1485 = vld [vmem:[%s1 + $0x94] sm:$0x3]
    %v1486 = vpack.c.bf16 %v1324, %v1323
    %v1487 = vpack.c.bf16 %v1326, %v1325
    %v1488 = vpack.c.bf16 %v1327, %v1327
    %v1491 = vunpack.c.l.b16 %v1484
    %v1492 = vunpack.c.l.b16 %v1485
    %v1493 = vpack.c.b16 %v1492, %v1491
    %v1495 = vsel %vm1010, %v1486, 0
    %v1498 = vsel %vm1010, %v1487, 0
    %v1501 = vsel %vm1010, %v1488, 0
    %v1504 = vsel %vm1023, %v1493, 0
    %1506 = vmatprep.subr.bf16.mxu0 0
    %1507 = vmatpush1.bf16.msra.mxu0 %v1504
    %1508 = vmatprep.subr.bf16.mxu0 0
    %1509 = vmatpush1.bf16.msra.mxu0 0
    %1510 = vmatprep.subr.bf16.mxu0 0
    %1511 = vmatpush1.bf16.msra.mxu0 0
    %1512 = vmatprep.subr.bf16.mxu0 0
    %1513 = vmatpush1.bf16.msra.mxu0 0
    %1514 = vmatprep.subr.bf16.mxu0 0
    %1515 = vmatpush1.bf16.msra.mxu0 0
    %1516 = vmatprep.subr.bf16.mxu0 0
    %1517 = vmatpush1.bf16.msra.mxu0 0
    %1518 = vmatprep.subr.bf16.mxu0 0
    %1519 = vmatpush1.bf16.msra.mxu0 0
    %1520 = vmatprep.subr.bf16.mxu0 0
    %1521 = vmatpush1.bf16.msra.mxu0 0
    %1522 = vmatprep.subr.bf16.mxu0 0
    %1523 = vmatpush1.bf16.msra.mxu0 0
    %1524 = vmatprep.subr.bf16.mxu0 0
    %1525 = vmatpush1.bf16.msra.mxu0 0
    %1526 = vmatprep.subr.bf16.mxu0 0
    %1527 = vmatpush1.bf16.msra.mxu0 0
    %1528 = vmatprep.subr.bf16.mxu0 0
    %1529 = vmatpush1.bf16.msra.mxu0 0
    %1530 = vmatprep.subr.bf16.mxu0 0
    %1531 = vmatpush1.bf16.msra.mxu0 0
    %1532 = vmatprep.subr.bf16.mxu0 0
    %1533 = vmatpush1.bf16.msra.mxu0 0
    %1534 = vmatprep.subr.bf16.mxu0 0
    %1535 = vmatpush1.bf16.msra.mxu0 0
    %1536 = vmatprep.subr.bf16.mxu0 0
    %1537 = vmatpush1.bf16.msra.mxu0 0
    %1538 = vmatprep.mubr.bf16.mxu0 0
    %1539 = vmatmul.mubr.bf16.gmra.mrb[0].mxu0 %v1495
    %v1540 = vpop.f32.mrb[0].mxu0
    %v1541 = vadd.f32 0.0, %v1540
    %v1542 = vpop.f32.mrb[0].mxu0
    %v1543 = vpop.f32.mrb[0].mxu0
    %v1544 = vpop.f32.mrb[0].mxu0
    %1545 = vmatprep.mubr.bf16.mxu0 0
    %1546 = vmatmul.mubr.bf16.gmra.mrb[0].mxu0 %v1498
    %v1547 = vpop.f32.mrb[0].mxu0
    %v1548 = vpop.f32.mrb[0].mxu0
    %v1549 = vpop.f32.mrb[0].mxu0
    %v1550 = vpop.f32.mrb[0].mxu0
    %1551 = vmatprep.mubr.bf16.mxu0 0
    %1552 = vmatmul.mubr.bf16.gmra.mrb[0].mxu0 %v1501
    %v1553 = vpop.f32.mrb[0].mxu0
    %v1554 = vadd.f32 0.0, %v1553
    %v1555 = vpop.f32.mrb[0].mxu0
    %v1556 = vpop.f32.mrb[0].mxu0
    %v1557 = vpop.f32.mrb[0].mxu0
    %1558 = vdwg.mxu0
    %v1559 = vadd.f32 %v1466, %v1541
    %v1560 = vadd.f32 %v1479, %v1554
    %v1561 = vld [vmem:[%s1 + $0x98] sm:$0xf]
    %v1562 = vld [vmem:[%s1 + $0x9c] sm:$0x3]
    %v1566 = vrot.slane %v1486, 2
    %v1567 = vrot.slane %v1487, 2
    %v1568 = vsel %vm872, %v1566, %v1567
    %v1569 = vrot.slane %v1488, 2
    %v1570 = vsel %vm872, %v1567, %v1569
    %v1573 = vunpack.c.l.b16 %v1561
    %v1574 = vunpack.c.l.b16 %v1562
    %v1575 = vpack.c.b16 %v1574, %v1573
    %v1577 = vsel %vm1010, %v1568, 0
    %v1580 = vsel %vm1010, %v1570, 0
    %v1583 = vsel %vm1010, %v1569, 0
    %v1586 = vsel %vm1023, %v1575, 0
    %1588 = vmatprep.subr.bf16.mxu0 0
    %1589 = vmatpush1.bf16.msra.mxu0 %v1586
    %1590 = vmatprep.subr.bf16.mxu0 0
    %1591 = vmatpush1.bf16.msra.mxu0 0
    %1592 = vmatprep.subr.bf16.mxu0 0
    %1593 = vmatpush1.bf16.msra.mxu0 0
    %1594 = vmatprep.subr.bf16.mxu0 0
    %1595 = vmatpush1.bf16.msra.mxu0 0
    %1596 = vmatprep.subr.bf16.mxu0 0
    %1597 = vmatpush1.bf16.msra.mxu0 0
    %1598 = vmatprep.subr.bf16.mxu0 0
    %1599 = vmatpush1.bf16.msra.mxu0 0
    %1600 = vmatprep.subr.bf16.mxu0 0
    %1601 = vmatpush1.bf16.msra.mxu0 0
    %1602 = vmatprep.subr.bf16.mxu0 0
    %1603 = vmatpush1.bf16.msra.mxu0 0
    %1604 = vmatprep.subr.bf16.mxu0 0
    %1605 = vmatpush1.bf16.msra.mxu0 0
    %1606 = vmatprep.subr.bf16.mxu0 0
    %1607 = vmatpush1.bf16.msra.mxu0 0
    %1608 = vmatprep.subr.bf16.mxu0 0
    %1609 = vmatpush1.bf16.msra.mxu0 0
    %1610 = vmatprep.subr.bf16.mxu0 0
    %1611 = vmatpush1.bf16.msra.mxu0 0
    %1612 = vmatprep.subr.bf16.mxu0 0
    %1613 = vmatpush1.bf16.msra.mxu0 0
    %1614 = vmatprep.subr.bf16.mxu0 0
    %1615 = vmatpush1.bf16.msra.mxu0 0
    %1616 = vmatprep.subr.bf16.mxu0 0
    %1617 = vmatpush1.bf16.msra.mxu0 0
    %1618 = vmatprep.subr.bf16.mxu0 0
    %1619 = vmatpush1.bf16.msra.mxu0 0
    %1620 = vmatprep.mubr.bf16.mxu0 0
    %1621 = vmatmul.mubr.bf16.gmra.mrb[0].mxu0 %v1577
    %v1622 = vpop.f32.mrb[0].mxu0
    %v1623 = vadd.f32 0.0, %v1622
    %v1624 = vpop.f32.mrb[0].mxu0
    %v1625 = vpop.f32.mrb[0].mxu0
    %v1626 = vpop.f32.mrb[0].mxu0
    %1627 = vmatprep.mubr.bf16.mxu0 0
    %1628 = vmatmul.mubr.bf16.gmra.mrb[0].mxu0 %v1580
    %v1629 = vpop.f32.mrb[0].mxu0
    %v1630 = vpop.f32.mrb[0].mxu0
    %v1631 = vpop.f32.mrb[0].mxu0
    %v1632 = vpop.f32.mrb[0].mxu0
    %1633 = vmatprep.mubr.bf16.mxu0 0
    %1634 = vmatmul.mubr.bf16.gmra.mrb[0].mxu0 %v1583
    %v1635 = vpop.f32.mrb[0].mxu0
    %v1636 = vadd.f32 0.0, %v1635
    %v1637 = vpop.f32.mrb[0].mxu0
    %v1638 = vpop.f32.mrb[0].mxu0
    %v1639 = vpop.f32.mrb[0].mxu0
    %1640 = vdwg.mxu0
    %v1641 = vadd.f32 %v1559, %v1623
    %v1642 = vadd.f32 %v1560, %v1636
    %v1643 = vld [vmem:[%s1 + $0xa0] sm:$0xf]
    %v1644 = vld [vmem:[%s1 + $0xa4] sm:$0x3]
    %v1645 = vpack.c.bf16 %v1327, %v1326
    %v1646 = vpack.c.bf16 %v1328, %v1328
    %v1649 = vunpack.c.l.b16 %v1643
    %v1650 = vunpack.c.l.b16 %v1644
    %v1651 = vpack.c.b16 %v1650, %v1649
    %v1653 = vsel %vm1010, %v1645, 0
    %v1656 = vsel %vm1010, %v1646, 0
    %v1659 = vsel %vm1023, %v1651, 0
    %1661 = vmatprep.subr.bf16.mxu0 0
    %1662 = vmatpush1.bf16.msra.mxu0 %v1659
    %1663 = vmatprep.subr.bf16.mxu0 0
    %1664 = vmatpush1.bf16.msra.mxu0 0
    %1665 = vmatprep.subr.bf16.mxu0 0
    %1666 = vmatpush1.bf16.msra.mxu0 0
    %1667 = vmatprep.subr.bf16.mxu0 0
    %1668 = vmatpush1.bf16.msra.mxu0 0
    %1669 = vmatprep.subr.bf16.mxu0 0
    %1670 = vmatpush1.bf16.msra.mxu0 0
    %1671 = vmatprep.subr.bf16.mxu0 0
    %1672 = vmatpush1.bf16.msra.mxu0 0
    %1673 = vmatprep.subr.bf16.mxu0 0
    %1674 = vmatpush1.bf16.msra.mxu0 0
    %1675 = vmatprep.subr.bf16.mxu0 0
    %1676 = vmatpush1.bf16.msra.mxu0 0
    %1677 = vmatprep.subr.bf16.mxu0 0
    %1678 = vmatpush1.bf16.msra.mxu0 0
    %1679 = vmatprep.subr.bf16.mxu0 0
    %1680 = vmatpush1.bf16.msra.mxu0 0
    %1681 = vmatprep.subr.bf16.mxu0 0
    %1682 = vmatpush1.bf16.msra.mxu0 0
    %1683 = vmatprep.subr.bf16.mxu0 0
    %1684 = vmatpush1.bf16.msra.mxu0 0
    %1685 = vmatprep.subr.bf16.mxu0 0
    %1686 = vmatpush1.bf16.msra.mxu0 0
    %1687 = vmatprep.subr.bf16.mxu0 0
    %1688 = vmatpush1.bf16.msra.mxu0 0
    %1689 = vmatprep.subr.bf16.mxu0 0
    %1690 = vmatpush1.bf16.msra.mxu0 0
    %1691 = vmatprep.subr.bf16.mxu0 0
    %1692 = vmatpush1.bf16.msra.mxu0 0
    %1693 = vmatprep.mubr.bf16.mxu0 0
    %1694 = vmatmul.mubr.bf16.gmra.mrb[0].mxu0 %v1423
    %v1695 = vpop.f32.mrb[0].mxu0
    %v1696 = vadd.f32 0.0, %v1695
    %v1697 = vpop.f32.mrb[0].mxu0
    %v1698 = vpop.f32.mrb[0].mxu0
    %v1699 = vpop.f32.mrb[0].mxu0
    %1700 = vmatprep.mubr.bf16.mxu0 0
    %1701 = vmatmul.mubr.bf16.gmra.mrb[0].mxu0 %v1653
    %v1702 = vpop.f32.mrb[0].mxu0
    %v1703 = vpop.f32.mrb[0].mxu0
    %v1704 = vpop.f32.mrb[0].mxu0
    %v1705 = vpop.f32.mrb[0].mxu0
    %1706 = vmatprep.mubr.bf16.mxu0 0
    %1707 = vmatmul.mubr.bf16.gmra.mrb[0].mxu0 %v1656
    %v1708 = vpop.f32.mrb[0].mxu0
    %v1709 = vadd.f32 0.0, %v1708
    %v1710 = vpop.f32.mrb[0].mxu0
    %v1711 = vpop.f32.mrb[0].mxu0
    %v1712 = vpop.f32.mrb[0].mxu0
    %1713 = vdwg.mxu0
    %v1714 = vadd.f32 %v1641, %v1696
    %v1715 = vadd.f32 %v1642, %v1709
    %v1716 = vld [vmem:[%s1 + $0xa8] sm:$0x1]
    %v1717 = vunpack.c.l.bf16 %v1716
    %v1718 = vlaneseq
    %v1719 = vshrl.u32 %v1718, 7
    %v1720 = vsub.s32 0, %v1719
    %v1721 = vrot.slane %v1717, %v1720
    %v1722 = vadd.f32 %v1714, %v1721
    %v1723 = vadd.f32 %v1715, %v1721
    %v1724 = vmax.f32 %v1722, 0.0
    %v1725 = vmax.f32 %v1723, 0.0
    %v1727 = vrot.slane %v1725, 7
    %vm1729 = vcmask 1040384
    %v1730 = vsel %vm1729, %v1724, %v1727
    %v1731 = vld [vmem:[%s1 + $0xb0] sm:$0xf]
    %v1732 = vld [vmem:[%s1 + $0xb4] sm:$0xf]
    %v1733 = vld [vmem:[%s1 + $0xb8] sm:$0xf]
    %v1734 = vld [vmem:[%s1 + $0xbc] sm:$0xf]
    %v1735 = vld [vmem:[%s1 + $0xc0] sm:$0x1]
    %v1736 = vunpack.c.l.bf16 %v1735
    %v1737 = vpack.c.bf16 %v1730, %v1730
    %v1738 = vlaneseq
    %v1739 = vshrl.u32 %v1738, 7
    %v1740 = vsub.s32 0, %v1739
    %v1741 = vrot.slane %v1736, %v1740
    %v1746 = vunpack.c.l.b16 %v1731
    %v1747 = vunpack.c.l.b16 %v1732
    %v1748 = vunpack.c.l.b16 %v1733
    %v1749 = vunpack.c.l.b16 %v1734
    %v1750 = vpack.c.b16 %v1747, %v1746
    %v1751 = vpack.c.b16 %v1749, %v1748
    %vm1754 = vcmask 261120
    %v1756 = vsel %vm1754, %v1737, 0
    %1758 = vmatprep.subr.bf16.mxu0 0
    %1759 = vmatpush1.bf16.msra.mxu0 %v1750
    %1760 = vmatprep.subr.bf16.mxu0 0
    %1761 = vmatpush1.bf16.msra.mxu0 %v1751
    %1762 = vmatprep.subr.bf16.mxu0 0
    %1763 = vmatpush1.bf16.msra.mxu0 0
    %1764 = vmatprep.subr.bf16.mxu0 0
    %1765 = vmatpush1.bf16.msra.mxu0 0
    %1766 = vmatprep.subr.bf16.mxu0 0
    %1767 = vmatpush1.bf16.msra.mxu0 0
    %1768 = vmatprep.subr.bf16.mxu0 0
    %1769 = vmatpush1.bf16.msra.mxu0 0
    %1770 = vmatprep.subr.bf16.mxu0 0
    %1771 = vmatpush1.bf16.msra.mxu0 0
    %1772 = vmatprep.subr.bf16.mxu0 0
    %1773 = vmatpush1.bf16.msra.mxu0 0
    %1774 = vmatprep.subr.bf16.mxu0 0
    %1775 = vmatpush1.bf16.msra.mxu0 0
    %1776 = vmatprep.subr.bf16.mxu0 0
    %1777 = vmatpush1.bf16.msra.mxu0 0
    %1778 = vmatprep.subr.bf16.mxu0 0
    %1779 = vmatpush1.bf16.msra.mxu0 0
    %1780 = vmatprep.subr.bf16.mxu0 0
    %1781 = vmatpush1.bf16.msra.mxu0 0
    %1782 = vmatprep.subr.bf16.mxu0 0
    %1783 = vmatpush1.bf16.msra.mxu0 0
    %1784 = vmatprep.subr.bf16.mxu0 0
    %1785 = vmatpush1.bf16.msra.mxu0 0
    %1786 = vmatprep.subr.bf16.mxu0 0
    %1787 = vmatpush1.bf16.msra.mxu0 0
    %1788 = vmatprep.subr.bf16.mxu0 0
    %1789 = vmatpush1.bf16.msra.mxu0 0
    %1790 = vmatprep.mubr.bf16.mxu0 0
    %1791 = vmatmul.mubr.bf16.gmra.mrb[0].mxu0 %v1756
    %v1792 = vpop.f32.mrb[0].mxu0
    %v1793 = vadd.f32 %v1741, %v1792
    %v1794 = vpop.f32.mrb[0].mxu0
    %v1795 = vpop.f32.mrb[0].mxu0
    %v1796 = vpop.f32.mrb[0].mxu0
    %1797 = vdwg.mxu0
    %vm1798 = vcmask 66560
    %v1799 = vsel %vm1798, %v1793, -inf
    %1800 = vmax.xlane.f32.xlu0 %v1799
    %v1801 = vpop.xlane.xlu0 %1800
    %v1802 = vsub.f32 %v1793, %v1801
    %v1803 = vmul.f32 %v1802, 1.442695
    %v1804 = vpow.pop %v1803
    %v1805 = vsel %vm1798, %v1804, 0.0
    %1806 = vadd.xlane.f32.xlu0 %v1805
    %v1807 = vpop.xlane.xlu0 %1806
    %v1808 = vrcp.pop %v1807
    %v1809 = vlaneseq
    %v1810 = vand.u32 %v1809, 127
    %vm1811 = vcmp.lt.s32.totalorder %v1810, 9
    %v1812 = vmul.f32 %v1804, %v1808
    %v1813 = vsel %vm1811, %v1812, %v1793
    %1814 = vst [vmem:[#allocation2] sm:$0x3] %v1813
    // Predicated region
    $region10: #{bad_model_forward.1} parent=1 // pred_check
      _
    $region11: #{bad_model_forward.1} parent=1 // pred_check_branch
      %1816 = sbr.rel (0) target = $region13
    $region12: #{bad_model_forward.1} parent=1 // pred_region
      %s1818 = ssub.s32 32, 32
      %1819 = vsyncadd [#allocation3], %s1818
      %s1821 = sshll.u32 [#allocation2], 4
      %s1822 = int_to_ptr.vmem [resolvable:$true] %s1821
      %1824 = dma.vmem_to_hbm [thread:$0]  %s1822, 32, %s2, [#allocation3]
    $region13: #{bad_model_forward.1} parent=1 // pred_fallthru
      _
    // Predicated region
    $region14: #{bad_model_forward.1} parent=1 // pred_check
      _
    $region15: #{bad_model_forward.1} parent=1 // pred_check_branch
      %1826 = sbr.rel (0) target = $region17
    $region16: #{bad_model_forward.1} parent=1 // pred_region
      %1827 = dma.done [#allocation3], 32
    $region17: #{bad_model_forward.1} parent=1 // pred_fallthru
      _
    %1828 = vsyncpa [#allocation3], 1

</llo_original>
